<compile_context>
chip_gen: v5e
topology: v5e:2x2
jax: 0.10.0
libtpu: 0.0.40
codegen_flags: <defaults>
</compile_context>

<pallas_src>
import jax
import jax.numpy as jnp
from jax.experimental import pallas as pl
from jax.experimental.pallas import tpu as pltpu


def ntl_kernel(x1t_ref, x2t_ref, w_ref, b_ref, u_ref, ub_ref, out_ref):
    x1t = x1t_ref[...]                                   # (H, TB) f32
    x2t = x2t_ref[...]                                   # (H, TB) f32
    H, TB = x1t.shape

    # Kronecker features along the sublane axis:
    #   xx[p*H + q, b] = x1[b, p] * x2[b, q]
    xx = (x1t[:, None, :] * x2t[None, :, :]).reshape(H * H, TB)
    feats = jnp.concatenate([xx, x1t, x2t], axis=0)      # (H*H + 2H, TB)

    w = w_ref[...]                                       # (K, H*H + 2H), f32/bf16
    y = jnp.dot(w, feats.astype(w.dtype),
                preferred_element_type=jnp.float32)      # (K, TB), f32 accumulate
    y = y + b_ref[...]                                   # + (K, 1) fused bias
    t = jnp.tanh(y)                                      # (K, TB)

    # u-projection as a sublane reduction (no N=1 MXU dot).
    z = jnp.sum(t * u_ref[...], axis=0, keepdims=True) + ub_ref[0]   # (1, TB)
    out_ref[...] = jax.nn.sigmoid(z)                     # lane-dense store


def neural_tensor_layer(x1, x2, params, *, block_b=128):
    """x1, x2: (B, H) float32.  params: see pack_params()."""
    B, H = x1.shape
    K = params["b_col"].shape[0]
    F = params["w_t"].shape[1]

    # Batch tile: full batch if small, else 128-lane tiles (pad batch up).
    tb = B if B <= block_b else block_b
    n_tiles = -(-B // tb)
    Bp = n_tiles * tb

    x1t = x1.T.astype(jnp.float32)                       # (H, B)
    x2t = x2.T.astype(jnp.float32)
    if Bp != B:
        x1t = jnp.pad(x1t, ((0, 0), (0, Bp - B)))
        x2t = jnp.pad(x2t, ((0, 0), (0, Bp - B)))

    out = pl.pallas_call(
        ntl_kernel,
        out_shape=jax.ShapeDtypeStruct((1, Bp), jnp.float32),
        grid=(n_tiles,),
        in_specs=[
            pl.BlockSpec((H, tb), lambda i: (0, i)),     # x1^T tile
            pl.BlockSpec((H, tb), lambda i: (0, i)),     # x2^T tile
            pl.BlockSpec((K, F), lambda i: (0, 0)),      # fused weight (resident)
            pl.BlockSpec((K, 1), lambda i: (0, 0)),      # fused bias column
            pl.BlockSpec((K, 1), lambda i: (0, 0)),      # u weight column
            pl.BlockSpec(memory_space=pltpu.MemorySpace.SMEM),  # u bias scalar
        ],
        out_specs=pl.BlockSpec((1, tb), lambda i: (0, i)),
        compiler_params=pltpu.CompilerParams(
            dimension_semantics=("parallel",),
        ),
    )(x1t, x2t, params["w_t"], params["b_col"], params["u_col"], params["u_b"])

    return out[0, :B].reshape(B, 1)


def pack_params(raw, *, matmul_dtype=jnp.float32):
    """Pack raw (PyTorch-layout) params into the fused kernel layout."""
    K, H, _ = raw["w_bil"].shape
    # w_t[j, p*H+q] = W[j, p, q]; last 2H columns are the Linear(2H, K) weight.
    w_t = jnp.concatenate([raw["w_bil"].reshape(K, H * H), raw["w_v"]], axis=1)
    return {
        "w_t": w_t.astype(matmul_dtype),                              # (K, H*H+2H)
        "b_col": (raw["b_bil"] + raw["b_v"] + raw["bias"])
                 .astype(jnp.float32).reshape(K, 1),                  # (K, 1)
        "u_col": raw["w_u"].astype(jnp.float32).reshape(K, 1),        # (K, 1)
        "u_b": raw["b_u"].astype(jnp.float32).reshape(1,),            # (1,) SMEM
    }


def init_params(key, hidden_size, k, *, matmul_dtype=jnp.float32):
    """Deterministic init mimicking PyTorch default uniform(-1/sqrt(fan_in))."""
    ks = jax.random.split(key, 6)
    H, K = hidden_size, k

    def u(key, shape, fan_in):
        bound = 1.0 / jnp.sqrt(fan_in)
        return jax.random.uniform(key, shape, jnp.float32, -bound, bound)

    raw = {
        "w_bil": u(ks[0], (K, H, H), H),        # nn.Bilinear weight (K, H, H)
        "b_bil": u(ks[1], (K,), H),             # nn.Bilinear bias
        "w_v":   u(ks[2], (K, 2 * H), 2 * H),   # nn.Linear(2H, K) weight
        "b_v":   u(ks[3], (K,), 2 * H),         # nn.Linear(2H, K) bias
        "bias":  jnp.zeros((1,), jnp.float32),  # extra scalar bias param
        "w_u":   u(ks[4], (1, K), K),           # nn.Linear(K, 1) weight
        "b_u":   u(ks[5], (1,), K),             # nn.Linear(K, 1) bias
    }
    return pack_params(raw, matmul_dtype=matmul_dtype), raw


def reference(x1, x2, raw):
    """Pure-JAX reference matching the PyTorch forward."""
    y1 = jnp.einsum("bp,jpq,bq->bj", x1, raw["w_bil"], x2) + raw["b_bil"]
    y2 = (jnp.concatenate([x1, x2], axis=1) @ raw["w_v"].T
          + raw["b_v"] + raw["bias"])
    t = jnp.tanh(y1 + y2)
    return jax.nn.sigmoid(t @ raw["w_u"].T + raw["b_u"])


if __name__ == "__main__":
    B, H, K = 200, 32, 128      # B=200 exercises batch tiling (2 tiles) + padding
    key = jax.random.PRNGKey(0)
    k_p, k_x1, k_x2 = jax.random.split(key, 3)
    params, raw = init_params(k_p, H, K)
    x1 = jax.random.normal(k_x1, (B, H), jnp.float32)
    x2 = jax.random.normal(k_x2, (B, H), jnp.float32)

    ref = reference(x1, x2, raw)

    # f32 MXU operands (exact path).
    out = neural_tensor_layer(x1, x2, params)
    jax.block_until_ready(out)
    assert out.shape == (B, 1)
    assert jnp.allclose(out, ref, atol=1e-4, rtol=1e-4), \
        float(jnp.max(jnp.abs(out - ref)))

    # bf16 MXU operands, f32 accumulation (v5e/v6e throughput path).
    params_bf16 = pack_params(raw, matmul_dtype=jnp.bfloat16)
    out_bf16 = neural_tensor_layer(x1, x2, params_bf16)
    jax.block_until_ready(out_bf16)
    assert float(jnp.max(jnp.abs(out_bf16 - ref))) < 5e-2

    print("KERNEL_OK")
</pallas_src>

<mosaic_0001>
module attributes {stable_mosaic.version = 11 : i64} {
  func.func @ntl_kernel(%arg0: i32, %arg1: memref<32x128xf32, #tpu.memory_space<vmem>>, %arg2: memref<32x128xf32, #tpu.memory_space<vmem>>, %arg3: memref<128x1088xf32, #tpu.memory_space<vmem>>, %arg4: memref<128x1xf32, #tpu.memory_space<vmem>>, %arg5: memref<128x1xf32, #tpu.memory_space<vmem>>, %arg6: memref<1xf32, #tpu.memory_space<smem>>, %arg7: memref<1x128xf32, #tpu.memory_space<vmem>>) attributes {dimension_semantics = [#tpu.dimension_semantics<parallel>], iteration_bounds = array<i64: 2>, scalar_prefetch = 0 : i64, scratch_operands = 0 : i64, tpu.core_type = #tpu.core_type<tc>, window_params = [{transform_indices = @transform_0, window_bounds = array<i64: 32, 128>}, {transform_indices = @transform_1, window_bounds = array<i64: 32, 128>}, {pipeline_mode = #tpu.pipeline_mode<synchronous>, transform_indices = @transform_2, window_bounds = array<i64: 128, 1088>}, {pipeline_mode = #tpu.pipeline_mode<synchronous>, transform_indices = @transform_3, window_bounds = array<i64: 128, 1>}, {pipeline_mode = #tpu.pipeline_mode<synchronous>, transform_indices = @transform_4, window_bounds = array<i64: 128, 1>}, {transform_indices = @transform_5, window_bounds = array<i64: 1>}, {transform_indices = @transform_6, window_bounds = array<i64: 1, 128>}]} {
    %c0 = arith.constant 0 : index
    %c0_0 = arith.constant 0 : index
    %0 = vector.load %arg1[%c0, %c0_0] : memref<32x128xf32, #tpu.memory_space<vmem>>, vector<32x128xf32>
    %c0_1 = arith.constant 0 : index
    %c0_2 = arith.constant 0 : index
    %1 = vector.load %arg2[%c0_1, %c0_2] : memref<32x128xf32, #tpu.memory_space<vmem>>, vector<32x128xf32>
    %2 = vector.shape_cast %0 : vector<32x128xf32> to vector<32x1x128xf32>
    %3 = vector.shape_cast %1 : vector<32x128xf32> to vector<1x32x128xf32>
    %4 = vector.broadcast %2 : vector<32x1x128xf32> to vector<32x32x128xf32>
    %5 = vector.broadcast %3 : vector<1x32x128xf32> to vector<32x32x128xf32>
    %6 = arith.mulf %4, %5 : vector<32x32x128xf32>
    %7 = vector.shape_cast %6 : vector<32x32x128xf32> to vector<1024x128xf32>
    %8 = tpu.concatenate %7, %0, %1 in 0 : vector<1024x128xf32>, vector<32x128xf32>, vector<32x128xf32> -> vector<1088x128xf32>
    %c0_3 = arith.constant 0 : index
    %c0_4 = arith.constant 0 : index
    %9 = vector.load %arg3[%c0_3, %c0_4] : memref<128x1088xf32, #tpu.memory_space<vmem>>, vector<128x1088xf32>
    %cst = arith.constant dense<0.000000e+00> : vector<128x128xf32>
    %10 = tpu.matmul %9, %8, %cst {dimension_numbers = #tpu.dot_dimension_numbers<[1], [0], [0], [1], [0, 0, 1, 1], [], []>} : vector<128x1088xf32>, vector<1088x128xf32>, vector<128x128xf32> -> vector<128x128xf32>
    %c0_5 = arith.constant 0 : index
    %c0_6 = arith.constant 0 : index
    %11 = vector.load %arg4[%c0_5, %c0_6] : memref<128x1xf32, #tpu.memory_space<vmem>>, vector<128x1xf32>
    %12 = vector.broadcast %11 : vector<128x1xf32> to vector<128x128xf32>
    %13 = arith.addf %10, %12 : vector<128x128xf32>
    %14 = math.tanh %13 : vector<128x128xf32>
    %c0_7 = arith.constant 0 : index
    %c0_8 = arith.constant 0 : index
    %15 = vector.load %arg5[%c0_7, %c0_8] : memref<128x1xf32, #tpu.memory_space<vmem>>, vector<128x1xf32>
    %16 = vector.broadcast %15 : vector<128x1xf32> to vector<128x128xf32>
    %17 = arith.mulf %14, %16 : vector<128x128xf32>
    %cst_9 = arith.constant dense<0.000000e+00> : vector<128xf32>
    %18 = vector.multi_reduction <add>, %17, %cst_9 [0] : vector<128x128xf32> to vector<128xf32>
    %19 = vector.shape_cast %18 : vector<128xf32> to vector<1x128xf32>
    %c0_10 = arith.constant 0 : index
    %20 = memref.load %arg6[%c0_10] : memref<1xf32, #tpu.memory_space<smem>>
    %21 = vector.broadcast %20 : f32 to vector<1x128xf32>
    %22 = arith.addf %19, %21 : vector<1x128xf32>
    %23 = arith.negf %22 : vector<1x128xf32>
    %24 = math.exp %23 : vector<1x128xf32>
    %cst_11 = arith.constant 1.000000e+00 : f32
    %25 = vector.broadcast %cst_11 : f32 to vector<1x128xf32>
    %26 = arith.addf %25, %24 : vector<1x128xf32>
    %27 = arith.divf %25, %26 : vector<1x128xf32>
    %c0_12 = arith.constant 0 : index
    %c0_13 = arith.constant 0 : index
    %28 = vector.load %arg7[%c0_12, %c0_13] : memref<1x128xf32, #tpu.memory_space<vmem>>, vector<1x128xf32>
    tpu.vector_store %arg7[%c0_12, %c0_13], %27 {strides = array<i32>} : memref<1x128xf32, #tpu.memory_space<vmem>>, vector<1x128xf32>,
    return
  }
  func.func @transform_0(%arg0: i32) -> (i32, i32) {
    %c0_i32 = arith.constant 0 : i32
    %c0_i32_0 = arith.constant 0 : i32
    return %c0_i32, %arg0 : i32, i32
  }
  func.func @transform_1(%arg0: i32) -> (i32, i32) {
    %c0_i32 = arith.constant 0 : i32
    %c0_i32_0 = arith.constant 0 : i32
    return %c0_i32, %arg0 : i32, i32
  }
  func.func @transform_2(%arg0: i32) -> (i32, i32) {
    %c0_i32 = arith.constant 0 : i32
    %c0_i32_0 = arith.constant 0 : i32
    %c0_i32_1 = arith.constant 0 : i32
    return %c0_i32, %c0_i32_0 : i32, i32
  }
  func.func @transform_3(%arg0: i32) -> (i32, i32) {
    %c0_i32 = arith.constant 0 : i32
    %c0_i32_0 = arith.constant 0 : i32
    %c0_i32_1 = arith.constant 0 : i32
    return %c0_i32, %c0_i32_0 : i32, i32
  }
  func.func @transform_4(%arg0: i32) -> (i32, i32) {
    %c0_i32 = arith.constant 0 : i32
    %c0_i32_0 = arith.constant 0 : i32
    %c0_i32_1 = arith.constant 0 : i32
    return %c0_i32, %c0_i32_0 : i32, i32
  }
  func.func @transform_5(%arg0: i32) -> i32 {
    %c0_i32 = arith.constant 0 : i32
    %c0_i32_0 = arith.constant 0 : i32
    return %c0_i32 : i32
  }
  func.func @transform_6(%arg0: i32) -> (i32, i32) {
    %c0_i32 = arith.constant 0 : i32
    %c0_i32_0 = arith.constant 0 : i32
    return %c0_i32, %arg0 : i32, i32
  }
}

</mosaic_0001>

<llo_original>
// kernel: tpu_custom_call.1
$region0: #{tpu_custom_call.1}
  #allocation0 [shape = 'u32[]', space=smem, size = 0x4, offset = 0x4, fixed_abs, tag = 'smem constant byte address 0x4 - core index']
  #allocation1 [shape = 'u32[72,128]{1,0:T(1,128)}', space=vmem, size = 0x9000, scoped, tag = 'internal scratch']
  #allocation2 [shape = 'f32[1]{0:T(128)S(6)}', space=smem, size = 0x200, scoped, tag = 'scoped memory for tpu_custom_call.1']
  %s0 = inlined_call_operand.vmem [shape: f32[32,256], index: 0, kind: input, shape index: {}]
  %s1 = inlined_call_operand.vmem [shape: f32[32,256], index: 1, kind: input, shape index: {}]
  %s2 = inlined_call_operand.vmem [shape: f32[128,1088], index: 2, kind: input, shape index: {}]
  %s3 = inlined_call_operand.vmem [shape: f32[128,1], index: 3, kind: input, shape index: {}]
  %s4 = inlined_call_operand.vmem [shape: f32[128,1], index: 4, kind: input, shape index: {}]
  %s5 = inlined_call_operand.<no memory space> [shape: f32[1], index: 5, kind: input, shape index: {}]
  %s6 = inlined_call_operand.hbm [shape: f32[1,256], index: 6, kind: output, shape index: {}]
  %s7 = sld [smem:[#allocation0]]
  $region133: #{tpu_custom_call.1} parent=0
    _
  %s9 = ssub.s32 1, %s7
  %s10 = scalar_select 0, %s9, %s7
  %11 = sst [smem:[#allocation2]] %s5
  $region1: #{tpu_custom_call.1} parent=0
    #allocation3 [shape = 'u8[32768]{0}', space=vmem, size = 0x8000, scoped, tag = 'input window, operand 0']
    #allocation4 [shape = 'u8[32768]{0}', space=vmem, size = 0x8000, scoped, tag = 'input window, operand 1']
    #allocation5 [shape = 'u8[1024]{0}', space=vmem, size = 0x400, scoped, tag = 'output window, operand 0']
    #allocation6 [shape = 's32[2]{0}', space=sflag, size = 0x8, scoped, tag = 'scoped memory for tpu_custom_call.1']
    %12 = vsyncpa [#allocation6], 0
    %s13 = scalar_lea.sflag [#allocation6], 1
    %14 = vsyncpa %s13, 0
    loop: start=0, step=1, limit=4
    $region2: #{tpu_custom_call.1} parent=1 // loop_pre_header
      _
    $region3: #{tpu_custom_call.1} parent=1 // loop_header
      %s16 = sphi 0, %s20
      %p17 = scmp.ge.s32.totalorder %s16, 4
      %s26 = sphi 0, %s28
      %s29 = sphi 0, %s26
      %s30 = sphi 0, %s29
      %s46 = sphi 0, %s30
      %s52 = sphi 0, %s54
      %s55 = sphi 0, %s52
      %s56 = sphi 0, %s55
      %s72 = sphi 0, %s56
      %s76 = sphi 0, %s76
      %s78 = sphi 0, %s76
      %s79 = sphi 0, %s78
      %s93 = sphi 0, %s79
      %s97 = sphi 0, %s97
      %s99 = sphi 0, %s97
      %s100 = sphi 0, %s99
      %s114 = sphi 0, %s100
      %s118 = sphi 0, %s118
      %s120 = sphi 0, %s118
      %s121 = sphi 0, %s120
      %s135 = sphi 0, %s121
      %s139 = sphi 0, %s139
      %s141 = sphi 0, %s139
      %s142 = sphi 0, %s141
      %s156 = sphi 0, %s142
      %s162 = sphi 0, %s164
      %s165 = sphi 0, %s162
      %s166 = sphi 0, %s165
      %s182 = sphi 0, %s166
    $region4: #{tpu_custom_call.1} parent=1 // loop_header_branch
      %19 = sbr.rel (%p17) target = $region8
    $region5: #{tpu_custom_call.1} parent=1 // loop_body
      %s21 = ssub.s32 %s16, 1
      %s22 = ssub.s32 %s16, 2
      %s23 = sadd.s32 %s16, 1
      %s24 = ssub.s32 %s16, %s23
      %p25 = scmp.eq.s32.totalorder %s24, 0
      %s27 = sadd.s32 %s26, 1
      %s28 = scalar_select %p25, %s26, %s27
      %p31 = pneg %p25
      %p32 = scmp.eq.s32.totalorder %s16, 1
      %p33 = por %p31, %p32
      %p34 = scmp.ne.s32.totalorder %s26, %s29
      %p35 = scmp.eq.s32.totalorder %s16, 0
      %p36 = por %p34, %p35
      %p37 = scmp.ne.s32.totalorder %s26, %s29
      %p38 = scmp.eq.s32.totalorder %s21, 1
      %p39 = por %p37, %p38
      %p40 = scmp.ne.s32.totalorder %s29, %s30
      %p41 = scmp.eq.s32.totalorder %s21, 0
      %p42 = por %p40, %p41
      %p43 = scmp.ne.s32.totalorder %s29, %s30
      %p44 = scmp.eq.s32.totalorder %s22, 1
      %p45 = por %p43, %p44
      %p47 = scmp.ne.s32.totalorder %s30, %s46
      %p48 = scmp.eq.s32.totalorder %s22, 0
      %p49 = por %p47, %p48
      %s50 = ssub.s32 %s16, %s23
      %p51 = scmp.eq.s32.totalorder %s50, 0
      %s53 = sadd.s32 %s52, 1
      %s54 = scalar_select %p51, %s52, %s53
      %p57 = pneg %p51
      %p58 = scmp.eq.s32.totalorder %s16, 1
      %p59 = por %p57, %p58
      %p60 = scmp.ne.s32.totalorder %s52, %s55
      %p61 = scmp.eq.s32.totalorder %s16, 0
      %p62 = por %p60, %p61
      %p63 = scmp.ne.s32.totalorder %s52, %s55
      %p64 = scmp.eq.s32.totalorder %s21, 1
      %p65 = por %p63, %p64
      %p66 = scmp.ne.s32.totalorder %s55, %s56
      %p67 = scmp.eq.s32.totalorder %s21, 0
      %p68 = por %p66, %p67
      %p69 = scmp.ne.s32.totalorder %s55, %s56
      %p70 = scmp.eq.s32.totalorder %s22, 1
      %p71 = por %p69, %p70
      %p73 = scmp.ne.s32.totalorder %s56, %s72
      %p74 = scmp.eq.s32.totalorder %s22, 0
      %p75 = por %p73, %p74
      %s77 = sadd.s32 %s76, 1
      %p80 = scmp.eq.s32.totalorder %s16, 1
      %p81 = scmp.ne.s32.totalorder %s76, %s78
      %p82 = scmp.eq.s32.totalorder %s16, 0
      %p83 = por %p81, %p82
      %p84 = scmp.ne.s32.totalorder %s76, %s78
      %p85 = scmp.eq.s32.totalorder %s21, 1
      %p86 = por %p84, %p85
      %p87 = scmp.ne.s32.totalorder %s78, %s79
      %p88 = scmp.eq.s32.totalorder %s21, 0
      %p89 = por %p87, %p88
      %p90 = scmp.ne.s32.totalorder %s78, %s79
      %p91 = scmp.eq.s32.totalorder %s22, 1
      %p92 = por %p90, %p91
      %p94 = scmp.ne.s32.totalorder %s79, %s93
      %p95 = scmp.eq.s32.totalorder %s22, 0
      %p96 = por %p94, %p95
      %s98 = sadd.s32 %s97, 1
      %p101 = scmp.eq.s32.totalorder %s16, 1
      %p102 = scmp.ne.s32.totalorder %s97, %s99
      %p103 = scmp.eq.s32.totalorder %s16, 0
      %p104 = por %p102, %p103
      %p105 = scmp.ne.s32.totalorder %s97, %s99
      %p106 = scmp.eq.s32.totalorder %s21, 1
      %p107 = por %p105, %p106
      %p108 = scmp.ne.s32.totalorder %s99, %s100
      %p109 = scmp.eq.s32.totalorder %s21, 0
      %p110 = por %p108, %p109
      %p111 = scmp.ne.s32.totalorder %s99, %s100
      %p112 = scmp.eq.s32.totalorder %s22, 1
      %p113 = por %p111, %p112
      %p115 = scmp.ne.s32.totalorder %s100, %s114
      %p116 = scmp.eq.s32.totalorder %s22, 0
      %p117 = por %p115, %p116
      %s119 = sadd.s32 %s118, 1
      %p122 = scmp.eq.s32.totalorder %s16, 1
      %p123 = scmp.ne.s32.totalorder %s118, %s120
      %p124 = scmp.eq.s32.totalorder %s16, 0
      %p125 = por %p123, %p124
      %p126 = scmp.ne.s32.totalorder %s118, %s120
      %p127 = scmp.eq.s32.totalorder %s21, 1
      %p128 = por %p126, %p127
      %p129 = scmp.ne.s32.totalorder %s120, %s121
      %p130 = scmp.eq.s32.totalorder %s21, 0
      %p131 = por %p129, %p130
      %p132 = scmp.ne.s32.totalorder %s120, %s121
      %p133 = scmp.eq.s32.totalorder %s22, 1
      %p134 = por %p132, %p133
      %p136 = scmp.ne.s32.totalorder %s121, %s135
      %p137 = scmp.eq.s32.totalorder %s22, 0
      %p138 = por %p136, %p137
      %s140 = sadd.s32 %s139, 1
      %p143 = scmp.eq.s32.totalorder %s16, 1
      %p144 = scmp.ne.s32.totalorder %s139, %s141
      %p145 = scmp.eq.s32.totalorder %s16, 0
      %p146 = por %p144, %p145
      %p147 = scmp.ne.s32.totalorder %s139, %s141
      %p148 = scmp.eq.s32.totalorder %s21, 1
      %p149 = por %p147, %p148
      %p150 = scmp.ne.s32.totalorder %s141, %s142
      %p151 = scmp.eq.s32.totalorder %s21, 0
      %p152 = por %p150, %p151
      %p153 = scmp.ne.s32.totalorder %s141, %s142
      %p154 = scmp.eq.s32.totalorder %s22, 1
      %p155 = por %p153, %p154
      %p157 = scmp.ne.s32.totalorder %s142, %s156
      %p158 = scmp.eq.s32.totalorder %s22, 0
      %p159 = por %p157, %p158
      %s160 = ssub.s32 %s16, %s23
      %p161 = scmp.eq.s32.totalorder %s160, 0
      %s163 = sadd.s32 %s162, 1
      %s164 = scalar_select %p161, %s162, %s163
      %p167 = pneg %p161
      %p168 = scmp.eq.s32.totalorder %s16, 1
      %p169 = por %p167, %p168
      %p170 = scmp.ne.s32.totalorder %s162, %s165
      %p171 = scmp.eq.s32.totalorder %s16, 0
      %p172 = por %p170, %p171
      %p173 = scmp.ne.s32.totalorder %s162, %s165
      %p174 = scmp.eq.s32.totalorder %s21, 1
      %p175 = por %p173, %p174
      %p176 = scmp.ne.s32.totalorder %s165, %s166
      %p177 = scmp.eq.s32.totalorder %s21, 0
      %p178 = por %p176, %p177
      %p179 = scmp.ne.s32.totalorder %s165, %s166
      %p180 = scmp.eq.s32.totalorder %s22, 1
      %p181 = por %p179, %p180
      %p183 = scmp.ne.s32.totalorder %s166, %s182
      %p184 = scmp.eq.s32.totalorder %s22, 0
      %p185 = por %p183, %p184
      %p186 = scmp.le.s32.totalorder 1, %s16
      %p187 = scmp.lt.s32.totalorder %s16, 3
      %p188 = pnand %p186, %p187
      %p189 = pneg %p188
      // Predicated region
      $region9: #{tpu_custom_call.1} parent=5 // pred_check
        _
      $region10: #{tpu_custom_call.1} parent=5 // pred_check_branch
        %191 = sbr.rel (%p188) target = $region12
      $region11: #{tpu_custom_call.1} parent=5 // pred_region
        %s192 = ssub.s32 %s16, 1
        // Predicated region
        $region13: #{tpu_custom_call.1} parent=11 // pred_check
          %p193 = pneg %p89
        $region14: #{tpu_custom_call.1} parent=11 // pred_check_branch
          %195 = sbr.rel (%p193) target = $region16
        $region15: #{tpu_custom_call.1} parent=11 // pred_region
          _
        $region16: #{tpu_custom_call.1} parent=11 // pred_fallthru
          _
        // Predicated region
        $region17: #{tpu_custom_call.1} parent=11 // pred_check
          %p196 = pneg %p110
        $region18: #{tpu_custom_call.1} parent=11 // pred_check_branch
          %198 = sbr.rel (%p196) target = $region20
        $region19: #{tpu_custom_call.1} parent=11 // pred_region
          _
        $region20: #{tpu_custom_call.1} parent=11 // pred_fallthru
          _
        // Predicated region
        $region21: #{tpu_custom_call.1} parent=11 // pred_check
          %p199 = pneg %p131
        $region22: #{tpu_custom_call.1} parent=11 // pred_check_branch
          %201 = sbr.rel (%p199) target = $region24
        $region23: #{tpu_custom_call.1} parent=11 // pred_region
          _
        $region24: #{tpu_custom_call.1} parent=11 // pred_fallthru
          _
        // Predicated region
        $region25: #{tpu_custom_call.1} parent=11 // pred_check
          %p202 = pneg %p152
        $region26: #{tpu_custom_call.1} parent=11 // pred_check_branch
          %204 = sbr.rel (%p202) target = $region28
        $region27: #{tpu_custom_call.1} parent=11 // pred_region
          _
        $region28: #{tpu_custom_call.1} parent=11 // pred_fallthru
          _
      $region12: #{tpu_custom_call.1} parent=5 // pred_fallthru
        _
      %p205 = scmp.lt.s32.totalorder %s16, 2
      // Predicated region
      $region29: #{tpu_custom_call.1} parent=5 // pred_check
        %p206 = pneg %p205
      $region30: #{tpu_custom_call.1} parent=5 // pred_check_branch
        %208 = sbr.rel (%p206) target = $region32
      $region31: #{tpu_custom_call.1} parent=5 // pred_region
        // Predicated region
        $region33: #{tpu_custom_call.1} parent=31 // pred_check
          %p209 = pneg %p36
        $region34: #{tpu_custom_call.1} parent=31 // pred_check_branch
          %211 = sbr.rel (%p209) target = $region36
        $region35: #{tpu_custom_call.1} parent=31 // pred_region
          %s212 = sand.u32 %s26, 1
          %s213 = sand.u32 %s26, 1
          %s214 = smul.addr %s213, 32
          %s215 = scalar_lea.vmem [#allocation3], %s214
          %s216 = smul.addr %s16, 8
          %s217 = scalar_lea.vmem %s0, %s216
          // Predicated region
          $region37: #{tpu_custom_call.1} parent=35 // pred_check
            _
          $region38: #{tpu_custom_call.1} parent=35 // pred_check_branch
            %219 = sbr.rel (0) target = $region40
          $region39: #{tpu_custom_call.1} parent=35 // pred_region
            // Predicated region
            $region41: #{tpu_custom_call.1} parent=39 // pred_check
              _
            $region42: #{tpu_custom_call.1} parent=39 // pred_check_branch
              %221 = sbr.rel (0) target = $region44
            $region43: #{tpu_custom_call.1} parent=39 // pred_region
              // Predicated region
              $region56: #{tpu_custom_call.1} parent=43 // pred_check
                _
              $region57: #{tpu_custom_call.1} parent=43 // pred_check_branch
                %243 = sbr.rel (0) target = $region59
              $region58: #{tpu_custom_call.1} parent=43 // pred_region
                loop: start=0, step=1, limit=1
                $region60: #{tpu_custom_call.1} parent=58 // loop_pre_header
                  _
                $region61: #{tpu_custom_call.1} parent=58 // loop_header
                  %s245 = sphi 0, %s249
                  %p246 = scmp.ge.s32.totalorder %s245, 1
                  %s250 = sphi %s217, %s217
                  %s251 = sphi %s215, %s215
                $region62: #{tpu_custom_call.1} parent=58 // loop_header_branch
                  %248 = sbr.rel (%p246) target = $region66
                $region63: #{tpu_custom_call.1} parent=58 // loop_body
                  %v252 = vld [vmem:[%s250] sm:$0xff]
                  %253 = vst [vmem:[%s251] sm:$0xff] %v252
                  %v254 = vld [vmem:[%s250 + $0x10] sm:$0xff]
                  %255 = vst [vmem:[%s251 + $0x8] sm:$0xff] %v254
                  %v256 = vld [vmem:[%s250 + $0x20] sm:$0xff]
                  %257 = vst [vmem:[%s251 + $0x10] sm:$0xff] %v256
                  %v258 = vld [vmem:[%s250 + $0x30] sm:$0xff]
                  %259 = vst [vmem:[%s251 + $0x18] sm:$0xff] %v258
                $region64: #{tpu_custom_call.1} parent=58 // loop_footer
                  %s249 = sadd.s32 1, %s245
                $region65: #{tpu_custom_call.1} parent=58 // loop_footer_branch
                  %244 = sbr.rel target = $region61
                $region66: #{tpu_custom_call.1} parent=58 // loop_exit
                  _
              $region59: #{tpu_custom_call.1} parent=43 // pred_fallthru
                _
              // Predicated region
              $region67: #{tpu_custom_call.1} parent=43 // pred_check
                _
              $region68: #{tpu_custom_call.1} parent=43 // pred_check_branch
                %261 = sbr.rel target = $region70
              $region69: #{tpu_custom_call.1} parent=43 // pred_region
                _
              $region70: #{tpu_custom_call.1} parent=43 // pred_fallthru
                _
            $region44: #{tpu_custom_call.1} parent=39 // pred_fallthru
              _
            // Predicated region
            $region45: #{tpu_custom_call.1} parent=39 // pred_check
              _
            $region46: #{tpu_custom_call.1} parent=39 // pred_check_branch
              %223 = sbr.rel target = $region48
            $region47: #{tpu_custom_call.1} parent=39 // pred_region
              %s225 = ssub.s32 256, 1
              loop: start=0, step=1, limit=1
              $region49: #{tpu_custom_call.1} parent=47 // loop_pre_header
                _
              $region50: #{tpu_custom_call.1} parent=47 // loop_header
                %s227 = sphi 0, %s231
                %p228 = scmp.ge.s32.totalorder %s227, 1
                %s232 = sphi %s217, %s217
                %s233 = sphi %s215, %s215
              $region51: #{tpu_custom_call.1} parent=47 // loop_header_branch
                %230 = sbr.rel (%p228) target = $region55
              $region52: #{tpu_custom_call.1} parent=47 // loop_body
                %v234 = vld [vmem:[%s232] sm:%s225]
                %235 = vst [vmem:[%s233] sm:%s225] %v234
                %v236 = vld [vmem:[%s232 + $0x10] sm:%s225]
                %237 = vst [vmem:[%s233 + $0x8] sm:%s225] %v236
                %v238 = vld [vmem:[%s232 + $0x20] sm:%s225]
                %239 = vst [vmem:[%s233 + $0x10] sm:%s225] %v238
                %v240 = vld [vmem:[%s232 + $0x30] sm:%s225]
                %241 = vst [vmem:[%s233 + $0x18] sm:%s225] %v240
              $region53: #{tpu_custom_call.1} parent=47 // loop_footer
                %s231 = sadd.s32 1, %s227
              $region54: #{tpu_custom_call.1} parent=47 // loop_footer_branch
                %226 = sbr.rel target = $region50
              $region55: #{tpu_custom_call.1} parent=47 // loop_exit
                _
            $region48: #{tpu_custom_call.1} parent=39 // pred_fallthru
              _
          $region40: #{tpu_custom_call.1} parent=35 // pred_fallthru
            _
          %262 = vnop
        $region36: #{tpu_custom_call.1} parent=31 // pred_fallthru
          _
        // Predicated region
        $region71: #{tpu_custom_call.1} parent=31 // pred_check
          %p263 = pneg %p62
        $region72: #{tpu_custom_call.1} parent=31 // pred_check_branch
          %265 = sbr.rel (%p263) target = $region74
        $region73: #{tpu_custom_call.1} parent=31 // pred_region
          %s266 = sand.u32 %s52, 1
          %s267 = sand.u32 %s52, 1
          %s268 = smul.addr %s267, 32
          %s269 = scalar_lea.vmem [#allocation4], %s268
          %s270 = smul.addr %s16, 8
          %s271 = scalar_lea.vmem %s1, %s270
          // Predicated region
          $region75: #{tpu_custom_call.1} parent=73 // pred_check
            _
          $region76: #{tpu_custom_call.1} parent=73 // pred_check_branch
            %273 = sbr.rel (0) target = $region78
          $region77: #{tpu_custom_call.1} parent=73 // pred_region
            // Predicated region
            $region79: #{tpu_custom_call.1} parent=77 // pred_check
              _
            $region80: #{tpu_custom_call.1} parent=77 // pred_check_branch
              %275 = sbr.rel (0) target = $region82
            $region81: #{tpu_custom_call.1} parent=77 // pred_region
              // Predicated region
              $region94: #{tpu_custom_call.1} parent=81 // pred_check
                _
              $region95: #{tpu_custom_call.1} parent=81 // pred_check_branch
                %297 = sbr.rel (0) target = $region97
              $region96: #{tpu_custom_call.1} parent=81 // pred_region
                loop: start=0, step=1, limit=1
                $region98: #{tpu_custom_call.1} parent=96 // loop_pre_header
                  _
                $region99: #{tpu_custom_call.1} parent=96 // loop_header
                  %s299 = sphi 0, %s303
                  %p300 = scmp.ge.s32.totalorder %s299, 1
                  %s304 = sphi %s271, %s271
                  %s305 = sphi %s269, %s269
                $region100: #{tpu_custom_call.1} parent=96 // loop_header_branch
                  %302 = sbr.rel (%p300) target = $region104
                $region101: #{tpu_custom_call.1} parent=96 // loop_body
                  %v306 = vld [vmem:[%s304] sm:$0xff]
                  %307 = vst [vmem:[%s305] sm:$0xff] %v306
                  %v308 = vld [vmem:[%s304 + $0x10] sm:$0xff]
                  %309 = vst [vmem:[%s305 + $0x8] sm:$0xff] %v308
                  %v310 = vld [vmem:[%s304 + $0x20] sm:$0xff]
                  %311 = vst [vmem:[%s305 + $0x10] sm:$0xff] %v310
                  %v312 = vld [vmem:[%s304 + $0x30] sm:$0xff]
                  %313 = vst [vmem:[%s305 + $0x18] sm:$0xff] %v312
                $region102: #{tpu_custom_call.1} parent=96 // loop_footer
                  %s303 = sadd.s32 1, %s299
                $region103: #{tpu_custom_call.1} parent=96 // loop_footer_branch
                  %298 = sbr.rel target = $region99
                $region104: #{tpu_custom_call.1} parent=96 // loop_exit
                  _
              $region97: #{tpu_custom_call.1} parent=81 // pred_fallthru
                _
              // Predicated region
              $region105: #{tpu_custom_call.1} parent=81 // pred_check
                _
              $region106: #{tpu_custom_call.1} parent=81 // pred_check_branch
                %315 = sbr.rel target = $region108
              $region107: #{tpu_custom_call.1} parent=81 // pred_region
                _
              $region108: #{tpu_custom_call.1} parent=81 // pred_fallthru
                _
            $region82: #{tpu_custom_call.1} parent=77 // pred_fallthru
              _
            // Predicated region
            $region83: #{tpu_custom_call.1} parent=77 // pred_check
              _
            $region84: #{tpu_custom_call.1} parent=77 // pred_check_branch
              %277 = sbr.rel target = $region86
            $region85: #{tpu_custom_call.1} parent=77 // pred_region
              %s279 = ssub.s32 256, 1
              loop: start=0, step=1, limit=1
              $region87: #{tpu_custom_call.1} parent=85 // loop_pre_header
                _
              $region88: #{tpu_custom_call.1} parent=85 // loop_header
                %s281 = sphi 0, %s285
                %p282 = scmp.ge.s32.totalorder %s281, 1
                %s286 = sphi %s271, %s271
                %s287 = sphi %s269, %s269
              $region89: #{tpu_custom_call.1} parent=85 // loop_header_branch
                %284 = sbr.rel (%p282) target = $region93
              $region90: #{tpu_custom_call.1} parent=85 // loop_body
                %v288 = vld [vmem:[%s286] sm:%s279]
                %289 = vst [vmem:[%s287] sm:%s279] %v288
                %v290 = vld [vmem:[%s286 + $0x10] sm:%s279]
                %291 = vst [vmem:[%s287 + $0x8] sm:%s279] %v290
                %v292 = vld [vmem:[%s286 + $0x20] sm:%s279]
                %293 = vst [vmem:[%s287 + $0x10] sm:%s279] %v292
                %v294 = vld [vmem:[%s286 + $0x30] sm:%s279]
                %295 = vst [vmem:[%s287 + $0x18] sm:%s279] %v294
              $region91: #{tpu_custom_call.1} parent=85 // loop_footer
                %s285 = sadd.s32 1, %s281
              $region92: #{tpu_custom_call.1} parent=85 // loop_footer_branch
                %280 = sbr.rel target = $region88
              $region93: #{tpu_custom_call.1} parent=85 // loop_exit
                _
            $region86: #{tpu_custom_call.1} parent=77 // pred_fallthru
              _
          $region78: #{tpu_custom_call.1} parent=73 // pred_fallthru
            _
          %316 = vnop
        $region74: #{tpu_custom_call.1} parent=31 // pred_fallthru
          _
      $region32: #{tpu_custom_call.1} parent=5 // pred_fallthru
        _
      %p317 = scmp.le.s32.totalorder 1, %s16
      %p318 = scmp.lt.s32.totalorder %s16, 3
      %p319 = pnand %p317, %p318
      %p320 = pneg %p319
      // Predicated region
      $region109: #{tpu_custom_call.1} parent=5 // pred_check
        _
      $region110: #{tpu_custom_call.1} parent=5 // pred_check_branch
        %322 = sbr.rel (%p319) target = $region112
      $region111: #{tpu_custom_call.1} parent=5 // pred_region
        %s323 = ssub.s32 %s16, 1
        %s324 = sand.u32 %s29, 1
        %s325 = sand.u32 %s29, 1
        %s326 = smul.addr %s325, 32
        %s327 = scalar_lea.vmem [#allocation3], %s326
        // Predicated region
        $region113: #{tpu_custom_call.1} parent=111 // pred_check
          %p328 = pneg %p42
        $region114: #{tpu_custom_call.1} parent=111 // pred_check_branch
          %330 = sbr.rel (%p328) target = $region116
        $region115: #{tpu_custom_call.1} parent=111 // pred_region
          _
        $region116: #{tpu_custom_call.1} parent=111 // pred_fallthru
          _
        %s331 = sand.u32 %s55, 1
        %s332 = sand.u32 %s55, 1
        %s333 = smul.addr %s332, 32
        %s334 = scalar_lea.vmem [#allocation4], %s333
        // Predicated region
        $region117: #{tpu_custom_call.1} parent=111 // pred_check
          %p335 = pneg %p68
        $region118: #{tpu_custom_call.1} parent=111 // pred_check_branch
          %337 = sbr.rel (%p335) target = $region120
        $region119: #{tpu_custom_call.1} parent=111 // pred_region
          _
        $region120: #{tpu_custom_call.1} parent=111 // pred_fallthru
          _
        %s338 = sand.u32 %s29, 1
        %s339 = sand.u32 %s29, 1
        %s340 = smul.addr %s339, 32
        %s341 = scalar_lea.vmem [#allocation3], %s340
        %p342 = pneg %p42
        %p343 = pneg %p39
        %s344 = sand.u32 %s55, 1
        %s345 = sand.u32 %s55, 1
        %s346 = smul.addr %s345, 32
        %s347 = scalar_lea.vmem [#allocation4], %s346
        %p348 = pneg %p68
        %p349 = pneg %p65
        %p350 = pneg %p89
        %p351 = pneg %p86
        %p352 = pneg %p110
        %p353 = pneg %p107
        %p354 = pneg %p131
        %p355 = pneg %p128
        %p356 = pneg %p152
        %p357 = pneg %p149
        %p358 = pneg %p178
        %p359 = pneg %p175
        %s360 = sand.u32 %s165, 1
        %s361 = scalar_lea.sflag [#allocation6], %s360
        %s362 = sand.u32 %s165, 1
        %s363 = scalar_lea.vmem [#allocation5], %s362
        %v364 = vld [vmem:[%s327] sm:$0xff]
        %v365 = vld [vmem:[%s327 + $0x8] sm:$0xff]
        %v366 = vld [vmem:[%s327 + $0x10] sm:$0xff]
        %v367 = vld [vmem:[%s327 + $0x18] sm:$0xff]
        %v368 = vld [vmem:[%s334] sm:$0xff]
        %v369 = vld [vmem:[%s334 + $0x8] sm:$0xff]
        %v370 = vld [vmem:[%s334 + $0x10] sm:$0xff]
        %v371 = vld [vmem:[%s334 + $0x18] sm:$0xff]
        %v376 = vrot.slane %v364, 1
        %v377 = vrot.slane %v364, 2
        %v378 = vrot.slane %v364, 3
        %v379 = vrot.slane %v364, 4
        %v380 = vrot.slane %v364, 5
        %v381 = vrot.slane %v364, 6
        %v382 = vrot.slane %v364, 7
        %v383 = vrot.slane %v365, 1
        %v384 = vrot.slane %v365, 2
        %v385 = vrot.slane %v365, 3
        %v386 = vrot.slane %v365, 4
        %v387 = vrot.slane %v365, 5
        %v388 = vrot.slane %v365, 6
        %v389 = vrot.slane %v365, 7
        %v390 = vrot.slane %v366, 1
        %v391 = vrot.slane %v366, 2
        %v392 = vrot.slane %v366, 3
        %v393 = vrot.slane %v366, 4
        %v394 = vrot.slane %v366, 5
        %v395 = vrot.slane %v366, 6
        %v396 = vrot.slane %v366, 7
        %v397 = vrot.slane %v367, 1
        %v398 = vrot.slane %v367, 2
        %v399 = vrot.slane %v367, 3
        %v400 = vrot.slane %v367, 4
        %v401 = vrot.slane %v367, 5
        %v402 = vrot.slane %v367, 6
        %v403 = vrot.slane %v367, 7
        %v404 = vperm.slane %v364, 0
        %v405 = vperm.slane %v376, 0
        %v406 = vperm.slane %v377, 0
        %v407 = vperm.slane %v378, 0
        %v408 = vperm.slane %v379, 0
        %v409 = vperm.slane %v380, 0
        %v410 = vperm.slane %v381, 0
        %v411 = vperm.slane %v382, 0
        %v412 = vperm.slane %v365, 0
        %v413 = vperm.slane %v383, 0
        %v414 = vperm.slane %v384, 0
        %v415 = vperm.slane %v385, 0
        %v416 = vperm.slane %v386, 0
        %v417 = vperm.slane %v387, 0
        %v418 = vperm.slane %v388, 0
        %v419 = vperm.slane %v389, 0
        %v420 = vperm.slane %v366, 0
        %v421 = vperm.slane %v390, 0
        %v422 = vperm.slane %v391, 0
        %v423 = vperm.slane %v392, 0
        %v424 = vperm.slane %v393, 0
        %v425 = vperm.slane %v394, 0
        %v426 = vperm.slane %v395, 0
        %v427 = vperm.slane %v396, 0
        %v428 = vperm.slane %v367, 0
        %v429 = vperm.slane %v397, 0
        %v430 = vperm.slane %v398, 0
        %v431 = vperm.slane %v399, 0
        %v432 = vperm.slane %v400, 0
        %v433 = vperm.slane %v401, 0
        %v434 = vperm.slane %v402, 0
        %v435 = vperm.slane %v403, 0
        %v468 = vmul.f32 %v404, %v368
        %v469 = vmul.f32 %v404, %v369
        %v470 = vmul.f32 %v404, %v370
        %v471 = vmul.f32 %v404, %v371
        %v472 = vmul.f32 %v405, %v368
        %v473 = vmul.f32 %v405, %v369
        %v474 = vmul.f32 %v405, %v370
        %v475 = vmul.f32 %v405, %v371
        %v476 = vmul.f32 %v406, %v368
        %v477 = vmul.f32 %v406, %v369
        %v478 = vmul.f32 %v406, %v370
        %v479 = vmul.f32 %v406, %v371
        %v480 = vmul.f32 %v407, %v368
        %v481 = vmul.f32 %v407, %v369
        %v482 = vmul.f32 %v407, %v370
        %v483 = vmul.f32 %v407, %v371
        %v484 = vmul.f32 %v408, %v368
        %v485 = vmul.f32 %v408, %v369
        %v486 = vmul.f32 %v408, %v370
        %v487 = vmul.f32 %v408, %v371
        %v488 = vmul.f32 %v409, %v368
        %v489 = vmul.f32 %v409, %v369
        %v490 = vmul.f32 %v409, %v370
        %v491 = vmul.f32 %v409, %v371
        %v492 = vmul.f32 %v410, %v368
        %v493 = vmul.f32 %v410, %v369
        %v494 = vmul.f32 %v410, %v370
        %v495 = vmul.f32 %v410, %v371
        %v496 = vmul.f32 %v411, %v368
        %v497 = vmul.f32 %v411, %v369
        %v498 = vmul.f32 %v411, %v370
        %v499 = vmul.f32 %v411, %v371
        %v500 = vmul.f32 %v412, %v368
        %v501 = vmul.f32 %v412, %v369
        %v502 = vmul.f32 %v412, %v370
        %v503 = vmul.f32 %v412, %v371
        %v504 = vmul.f32 %v413, %v368
        %v505 = vmul.f32 %v413, %v369
        %v506 = vmul.f32 %v413, %v370
        %v507 = vmul.f32 %v413, %v371
        %v508 = vmul.f32 %v414, %v368
        %v509 = vmul.f32 %v414, %v369
        %v510 = vmul.f32 %v414, %v370
        %v511 = vmul.f32 %v414, %v371
        %v512 = vmul.f32 %v415, %v368
        %v513 = vmul.f32 %v415, %v369
        %v514 = vmul.f32 %v415, %v370
        %v515 = vmul.f32 %v415, %v371
        %v516 = vmul.f32 %v416, %v368
        %v517 = vmul.f32 %v416, %v369
        %v518 = vmul.f32 %v416, %v370
        %v519 = vmul.f32 %v416, %v371
        %v520 = vmul.f32 %v417, %v368
        %v521 = vmul.f32 %v417, %v369
        %v522 = vmul.f32 %v417, %v370
        %v523 = vmul.f32 %v417, %v371
        %v524 = vmul.f32 %v418, %v368
        %v525 = vmul.f32 %v418, %v369
        %v526 = vmul.f32 %v418, %v370
        %v527 = vmul.f32 %v418, %v371
        %v528 = vmul.f32 %v419, %v368
        %v529 = vmul.f32 %v419, %v369
        %v530 = vmul.f32 %v419, %v370
        %v531 = vmul.f32 %v419, %v371
        %v532 = vmul.f32 %v420, %v368
        %v533 = vmul.f32 %v420, %v369
        %v534 = vmul.f32 %v420, %v370
        %v535 = vmul.f32 %v420, %v371
        %v536 = vmul.f32 %v421, %v368
        %v537 = vmul.f32 %v421, %v369
        %v538 = vmul.f32 %v421, %v370
        %v539 = vmul.f32 %v421, %v371
        %v540 = vmul.f32 %v422, %v368
        %v541 = vmul.f32 %v422, %v369
        %v542 = vmul.f32 %v422, %v370
        %v543 = vmul.f32 %v422, %v371
        %v544 = vmul.f32 %v423, %v368
        %v545 = vmul.f32 %v423, %v369
        %v546 = vmul.f32 %v423, %v370
        %v547 = vmul.f32 %v423, %v371
        %v548 = vmul.f32 %v424, %v368
        %v549 = vmul.f32 %v424, %v369
        %v550 = vmul.f32 %v424, %v370
        %v551 = vmul.f32 %v424, %v371
        %v552 = vmul.f32 %v425, %v368
        %v553 = vmul.f32 %v425, %v369
        %v554 = vmul.f32 %v425, %v370
        %v555 = vmul.f32 %v425, %v371
        %v556 = vmul.f32 %v426, %v368
        %v557 = vmul.f32 %v426, %v369
        %v558 = vmul.f32 %v426, %v370
        %v559 = vmul.f32 %v426, %v371
        %v560 = vmul.f32 %v427, %v368
        %v561 = vmul.f32 %v427, %v369
        %v562 = vmul.f32 %v427, %v370
        %v563 = vmul.f32 %v427, %v371
        %v564 = vmul.f32 %v428, %v368
        %v565 = vmul.f32 %v428, %v369
        %v566 = vmul.f32 %v428, %v370
        %v567 = vmul.f32 %v428, %v371
        %v568 = vmul.f32 %v429, %v368
        %v569 = vmul.f32 %v429, %v369
        %v570 = vmul.f32 %v429, %v370
        %v571 = vmul.f32 %v429, %v371
        %v572 = vmul.f32 %v430, %v368
        %v573 = vmul.f32 %v430, %v369
        %v574 = vmul.f32 %v430, %v370
        %v575 = vmul.f32 %v430, %v371
        %v576 = vmul.f32 %v431, %v368
        %v577 = vmul.f32 %v431, %v369
        %v578 = vmul.f32 %v431, %v370
        %v579 = vmul.f32 %v431, %v371
        %v580 = vmul.f32 %v432, %v368
        %v581 = vmul.f32 %v432, %v369
        %v582 = vmul.f32 %v432, %v370
        %v583 = vmul.f32 %v432, %v371
        %v584 = vmul.f32 %v433, %v368
        %v585 = vmul.f32 %v433, %v369
        %v586 = vmul.f32 %v433, %v370
        %v587 = vmul.f32 %v433, %v371
        %v588 = vmul.f32 %v434, %v368
        %v589 = vmul.f32 %v434, %v369
        %v590 = vmul.f32 %v434, %v370
        %v591 = vmul.f32 %v434, %v371
        %v592 = vmul.f32 %v435, %v368
        %v593 = vmul.f32 %v435, %v369
        %v594 = vmul.f32 %v435, %v370
        %v595 = vmul.f32 %v435, %v371
        %v596 = vld [vmem:[%s2] sm:$0xff]
        %v597 = vld [vmem:[%s2 + $0x8] sm:$0xff]
        %v598 = vld [vmem:[%s2 + $0x10] sm:$0xff]
        %v599 = vld [vmem:[%s2 + $0x18] sm:$0xff]
        %v600 = vld [vmem:[%s2 + $0x20] sm:$0xff]
        %v601 = vld [vmem:[%s2 + $0x28] sm:$0xff]
        %v602 = vld [vmem:[%s2 + $0x30] sm:$0xff]
        %v603 = vld [vmem:[%s2 + $0x38] sm:$0xff]
        %v604 = vld [vmem:[%s2 + $0x40] sm:$0xff]
        %v605 = vld [vmem:[%s2 + $0x48] sm:$0xff]
        %v606 = vld [vmem:[%s2 + $0x50] sm:$0xff]
        %v607 = vld [vmem:[%s2 + $0x58] sm:$0xff]
        %v608 = vld [vmem:[%s2 + $0x60] sm:$0xff]
        %v609 = vld [vmem:[%s2 + $0x68] sm:$0xff]
        %v610 = vld [vmem:[%s2 + $0x70] sm:$0xff]
        %v611 = vld [vmem:[%s2 + $0x78] sm:$0xff]
        %v612 = vld [vmem:[%s2 + $0x80] sm:$0xff]
        %v613 = vld [vmem:[%s2 + $0x88] sm:$0xff]
        %v614 = vld [vmem:[%s2 + $0x90] sm:$0xff]
        %v615 = vld [vmem:[%s2 + $0x98] sm:$0xff]
        %v616 = vld [vmem:[%s2 + $0xa0] sm:$0xff]
        %v617 = vld [vmem:[%s2 + $0xa8] sm:$0xff]
        %v618 = vld [vmem:[%s2 + $0xb0] sm:$0xff]
        %v619 = vld [vmem:[%s2 + $0xb8] sm:$0xff]
        %v620 = vld [vmem:[%s2 + $0xc0] sm:$0xff]
        %v621 = vld [vmem:[%s2 + $0xc8] sm:$0xff]
        %v622 = vld [vmem:[%s2 + $0xd0] sm:$0xff]
        %v623 = vld [vmem:[%s2 + $0xd8] sm:$0xff]
        %v624 = vld [vmem:[%s2 + $0xe0] sm:$0xff]
        %v625 = vld [vmem:[%s2 + $0xe8] sm:$0xff]
        %v626 = vld [vmem:[%s2 + $0xf0] sm:$0xff]
        %v627 = vld [vmem:[%s2 + $0xf8] sm:$0xff]
        %v628 = vld [vmem:[%s2 + $0x100] sm:$0xff]
        %v629 = vld [vmem:[%s2 + $0x108] sm:$0xff]
        %v630 = vld [vmem:[%s2 + $0x110] sm:$0xff]
        %v631 = vld [vmem:[%s2 + $0x118] sm:$0xff]
        %v632 = vld [vmem:[%s2 + $0x120] sm:$0xff]
        %v633 = vld [vmem:[%s2 + $0x128] sm:$0xff]
        %v634 = vld [vmem:[%s2 + $0x130] sm:$0xff]
        %v635 = vld [vmem:[%s2 + $0x138] sm:$0xff]
        %v636 = vld [vmem:[%s2 + $0x140] sm:$0xff]
        %v637 = vld [vmem:[%s2 + $0x148] sm:$0xff]
        %v638 = vld [vmem:[%s2 + $0x150] sm:$0xff]
        %v639 = vld [vmem:[%s2 + $0x158] sm:$0xff]
        %v640 = vld [vmem:[%s2 + $0x160] sm:$0xff]
        %v641 = vld [vmem:[%s2 + $0x168] sm:$0xff]
        %v642 = vld [vmem:[%s2 + $0x170] sm:$0xff]
        %v643 = vld [vmem:[%s2 + $0x178] sm:$0xff]
        %v644 = vld [vmem:[%s2 + $0x180] sm:$0xff]
        %v645 = vld [vmem:[%s2 + $0x188] sm:$0xff]
        %v646 = vld [vmem:[%s2 + $0x190] sm:$0xff]
        %v647 = vld [vmem:[%s2 + $0x198] sm:$0xff]
        %v648 = vld [vmem:[%s2 + $0x1a0] sm:$0xff]
        %v649 = vld [vmem:[%s2 + $0x1a8] sm:$0xff]
        %v650 = vld [vmem:[%s2 + $0x1b0] sm:$0xff]
        %v651 = vld [vmem:[%s2 + $0x1b8] sm:$0xff]
        %v652 = vld [vmem:[%s2 + $0x1c0] sm:$0xff]
        %v653 = vld [vmem:[%s2 + $0x1c8] sm:$0xff]
        %v654 = vld [vmem:[%s2 + $0x1d0] sm:$0xff]
        %v655 = vld [vmem:[%s2 + $0x1d8] sm:$0xff]
        %v656 = vld [vmem:[%s2 + $0x1e0] sm:$0xff]
        %v657 = vld [vmem:[%s2 + $0x1e8] sm:$0xff]
        %v658 = vld [vmem:[%s2 + $0x1f0] sm:$0xff]
        %v659 = vld [vmem:[%s2 + $0x1f8] sm:$0xff]
        %v660 = vld [vmem:[%s2 + $0x200] sm:$0xff]
        %v661 = vld [vmem:[%s2 + $0x208] sm:$0xff]
        %v662 = vld [vmem:[%s2 + $0x210] sm:$0xff]
        %v663 = vld [vmem:[%s2 + $0x218] sm:$0xff]
        %v664 = vld [vmem:[%s2 + $0x220] sm:$0xff]
        %v665 = vld [vmem:[%s2 + $0x228] sm:$0xff]
        %v666 = vld [vmem:[%s2 + $0x230] sm:$0xff]
        %v667 = vld [vmem:[%s2 + $0x238] sm:$0xff]
        %v668 = vld [vmem:[%s2 + $0x240] sm:$0xff]
        %v669 = vld [vmem:[%s2 + $0x248] sm:$0xff]
        %v670 = vld [vmem:[%s2 + $0x250] sm:$0xff]
        %v671 = vld [vmem:[%s2 + $0x258] sm:$0xff]
        %v672 = vld [vmem:[%s2 + $0x260] sm:$0xff]
        %v673 = vld [vmem:[%s2 + $0x268] sm:$0xff]
        %v674 = vld [vmem:[%s2 + $0x270] sm:$0xff]
        %v675 = vld [vmem:[%s2 + $0x278] sm:$0xff]
        %v676 = vld [vmem:[%s2 + $0x280] sm:$0xff]
        %v677 = vld [vmem:[%s2 + $0x288] sm:$0xff]
        %v678 = vld [vmem:[%s2 + $0x290] sm:$0xff]
        %v679 = vld [vmem:[%s2 + $0x298] sm:$0xff]
        %v680 = vld [vmem:[%s2 + $0x2a0] sm:$0xff]
        %v681 = vld [vmem:[%s2 + $0x2a8] sm:$0xff]
        %v682 = vld [vmem:[%s2 + $0x2b0] sm:$0xff]
        %v683 = vld [vmem:[%s2 + $0x2b8] sm:$0xff]
        %v684 = vld [vmem:[%s2 + $0x2c0] sm:$0xff]
        %v685 = vld [vmem:[%s2 + $0x2c8] sm:$0xff]
        %v686 = vld [vmem:[%s2 + $0x2d0] sm:$0xff]
        %v687 = vld [vmem:[%s2 + $0x2d8] sm:$0xff]
        %v688 = vld [vmem:[%s2 + $0x2e0] sm:$0xff]
        %v689 = vld [vmem:[%s2 + $0x2e8] sm:$0xff]
        %v690 = vld [vmem:[%s2 + $0x2f0] sm:$0xff]
        %v691 = vld [vmem:[%s2 + $0x2f8] sm:$0xff]
        %v692 = vld [vmem:[%s2 + $0x300] sm:$0xff]
        %v693 = vld [vmem:[%s2 + $0x308] sm:$0xff]
        %v694 = vld [vmem:[%s2 + $0x310] sm:$0xff]
        %v695 = vld [vmem:[%s2 + $0x318] sm:$0xff]
        %v696 = vld [vmem:[%s2 + $0x320] sm:$0xff]
        %v697 = vld [vmem:[%s2 + $0x328] sm:$0xff]
        %v698 = vld [vmem:[%s2 + $0x330] sm:$0xff]
        %v699 = vld [vmem:[%s2 + $0x338] sm:$0xff]
        %v700 = vld [vmem:[%s2 + $0x340] sm:$0xff]
        %v701 = vld [vmem:[%s2 + $0x348] sm:$0xff]
        %v702 = vld [vmem:[%s2 + $0x350] sm:$0xff]
        %v703 = vld [vmem:[%s2 + $0x358] sm:$0xff]
        %v704 = vld [vmem:[%s2 + $0x360] sm:$0xff]
        %v705 = vld [vmem:[%s2 + $0x368] sm:$0xff]
        %v706 = vld [vmem:[%s2 + $0x370] sm:$0xff]
        %v707 = vld [vmem:[%s2 + $0x378] sm:$0xff]
        %v708 = vld [vmem:[%s2 + $0x380] sm:$0xff]
        %v709 = vld [vmem:[%s2 + $0x388] sm:$0xff]
        %v710 = vld [vmem:[%s2 + $0x390] sm:$0xff]
        %v711 = vld [vmem:[%s2 + $0x398] sm:$0xff]
        %v712 = vld [vmem:[%s2 + $0x3a0] sm:$0xff]
        %v713 = vld [vmem:[%s2 + $0x3a8] sm:$0xff]
        %v714 = vld [vmem:[%s2 + $0x3b0] sm:$0xff]
        %v715 = vld [vmem:[%s2 + $0x3b8] sm:$0xff]
        %v716 = vld [vmem:[%s2 + $0x3c0] sm:$0xff]
        %v717 = vld [vmem:[%s2 + $0x3c8] sm:$0xff]
        %v718 = vld [vmem:[%s2 + $0x3d0] sm:$0xff]
        %v719 = vld [vmem:[%s2 + $0x3d8] sm:$0xff]
        %v720 = vld [vmem:[%s2 + $0x3e0] sm:$0xff]
        %v721 = vld [vmem:[%s2 + $0x3e8] sm:$0xff]
        %v722 = vld [vmem:[%s2 + $0x3f0] sm:$0xff]
        %v723 = vld [vmem:[%s2 + $0x3f8] sm:$0xff]
        %v724 = vld [vmem:[%s2 + $0x400] sm:$0xff]
        %v725 = vld [vmem:[%s2 + $0x408] sm:$0xff]
        %v726 = vld [vmem:[%s2 + $0x410] sm:$0xff]
        %v727 = vld [vmem:[%s2 + $0x418] sm:$0xff]
        %v728 = vld [vmem:[%s2 + $0x420] sm:$0xff]
        %v729 = vld [vmem:[%s2 + $0x428] sm:$0xff]
        %v730 = vld [vmem:[%s2 + $0x430] sm:$0xff]
        %v731 = vld [vmem:[%s2 + $0x438] sm:$0xff]
        %v732 = vld [vmem:[%s2 + $0x440] sm:$0xff]
        %v733 = vld [vmem:[%s2 + $0x448] sm:$0xff]
        %v734 = vld [vmem:[%s2 + $0x450] sm:$0xff]
        %v735 = vld [vmem:[%s2 + $0x458] sm:$0xff]
        %v736 = vld [vmem:[%s2 + $0x460] sm:$0xff]
        %v737 = vld [vmem:[%s2 + $0x468] sm:$0xff]
        %v738 = vld [vmem:[%s2 + $0x470] sm:$0xff]
        %v739 = vld [vmem:[%s2 + $0x478] sm:$0xff]
        %v740 = vld [vmem:[%s3] sm:$0xff]
        %v741 = vld [vmem:[%s3 + $0x8] sm:$0xff]
        %v742 = vld [vmem:[%s3 + $0x10] sm:$0xff]
        %v743 = vld [vmem:[%s3 + $0x18] sm:$0xff]
        %v744 = vld [vmem:[%s3 + $0x20] sm:$0xff]
        %v745 = vld [vmem:[%s3 + $0x28] sm:$0xff]
        %v746 = vld [vmem:[%s3 + $0x30] sm:$0xff]
        %v747 = vld [vmem:[%s3 + $0x38] sm:$0xff]
        %v748 = vld [vmem:[%s3 + $0x40] sm:$0xff]
        %v749 = vld [vmem:[%s3 + $0x48] sm:$0xff]
        %v750 = vld [vmem:[%s3 + $0x50] sm:$0xff]
        %v751 = vld [vmem:[%s3 + $0x58] sm:$0xff]
        %v752 = vld [vmem:[%s3 + $0x60] sm:$0xff]
        %v753 = vld [vmem:[%s3 + $0x68] sm:$0xff]
        %v754 = vld [vmem:[%s3 + $0x70] sm:$0xff]
        %v755 = vld [vmem:[%s3 + $0x78] sm:$0xff]
        %757 = vset.pattern.permute.xlu0 0
        %758 = vperm.xlu0 %757, %v740
        %v759 = vpop.permute.xlu0 %758
        %762 = vset.pattern.permute.xlu0 0
        %763 = vperm.xlu0 %762, %v741
        %v764 = vpop.permute.xlu0 %763
        %767 = vset.pattern.permute.xlu0 0
        %768 = vperm.xlu0 %767, %v742
        %v769 = vpop.permute.xlu0 %768
        %772 = vset.pattern.permute.xlu0 0
        %773 = vperm.xlu0 %772, %v743
        %v774 = vpop.permute.xlu0 %773
        %777 = vset.pattern.permute.xlu0 0
        %778 = vperm.xlu0 %777, %v744
        %v779 = vpop.permute.xlu0 %778
        %782 = vset.pattern.permute.xlu0 0
        %783 = vperm.xlu0 %782, %v745
        %v784 = vpop.permute.xlu0 %783
        %787 = vset.pattern.permute.xlu0 0
        %788 = vperm.xlu0 %787, %v746
        %v789 = vpop.permute.xlu0 %788
        %792 = vset.pattern.permute.xlu0 0
        %793 = vperm.xlu0 %792, %v747
        %v794 = vpop.permute.xlu0 %793
        %797 = vset.pattern.permute.xlu0 0
        %798 = vperm.xlu0 %797, %v748
        %v799 = vpop.permute.xlu0 %798
        %802 = vset.pattern.permute.xlu0 0
        %803 = vperm.xlu0 %802, %v749
        %v804 = vpop.permute.xlu0 %803
        %807 = vset.pattern.permute.xlu0 0
        %808 = vperm.xlu0 %807, %v750
        %v809 = vpop.permute.xlu0 %808
        %812 = vset.pattern.permute.xlu0 0
        %813 = vperm.xlu0 %812, %v751
        %v814 = vpop.permute.xlu0 %813
        %817 = vset.pattern.permute.xlu0 0
        %818 = vperm.xlu0 %817, %v752
        %v819 = vpop.permute.xlu0 %818
        %822 = vset.pattern.permute.xlu0 0
        %823 = vperm.xlu0 %822, %v753
        %v824 = vpop.permute.xlu0 %823
        %827 = vset.pattern.permute.xlu0 0
        %828 = vperm.xlu0 %827, %v754
        %v829 = vpop.permute.xlu0 %828
        %832 = vset.pattern.permute.xlu0 0
        %833 = vperm.xlu0 %832, %v755
        %v834 = vpop.permute.xlu0 %833
        %vm836 = vcmask 523264
        %v838 = vsel %vm836, %v604, 0
        %v841 = vsel %vm836, %v613, 0
        %v844 = vsel %vm836, %v622, 0
        %v847 = vsel %vm836, %v631, 0
        %v850 = vsel %vm836, %v640, 0
        %v853 = vsel %vm836, %v649, 0
        %v856 = vsel %vm836, %v658, 0
        %v859 = vsel %vm836, %v667, 0
        %v862 = vsel %vm836, %v676, 0
        %v865 = vsel %vm836, %v685, 0
        %v868 = vsel %vm836, %v694, 0
        %v871 = vsel %vm836, %v703, 0
        %v874 = vsel %vm836, %v712, 0
        %v877 = vsel %vm836, %v721, 0
        %v880 = vsel %vm836, %v730, 0
        %v883 = vsel %vm836, %v739, 0
        %885 = vmatpush.msra.mxu0 %v483
        %886 = vmatpush.msra.mxu0 %v482
        %887 = vmatpush.msra.mxu0 %v481
        %888 = vmatpush.msra.mxu0 %v480
        %889 = vmatpush.msra.mxu0 %v479
        %890 = vmatpush.msra.mxu0 %v478
        %891 = vmatpush.msra.mxu0 %v477
        %892 = vmatpush.msra.mxu0 %v476
        %893 = vmatpush.msra.mxu0 %v475
        %894 = vmatpush.msra.mxu0 %v474
        %895 = vmatpush.msra.mxu0 %v473
        %896 = vmatpush.msra.mxu0 %v472
        %897 = vmatpush.msra.mxu0 %v471
        %898 = vmatpush.msra.mxu0 %v470
        %899 = vmatpush.msra.mxu0 %v469
        %900 = vmatpush.msra.mxu0 %v468
        %901 = vmatmul.f32.gmra.mxu0 %v596
        %v902 = vpop.f32.mrf.mxu0
        %v903 = vadd.f32 %v759, %v902
        %904 = vmatmul.f32.gmra.mxu0 %v605
        %v905 = vpop.f32.mrf.mxu0
        %v906 = vadd.f32 %v764, %v905
        %907 = vmatmul.f32.gmra.mxu0 %v614
        %v908 = vpop.f32.mrf.mxu0
        %v909 = vadd.f32 %v769, %v908
        %910 = vmatmul.f32.gmra.mxu0 %v623
        %v911 = vpop.f32.mrf.mxu0
        %v912 = vadd.f32 %v774, %v911
        %913 = vmatmul.f32.gmra.mxu0 %v632
        %v914 = vpop.f32.mrf.mxu0
        %v915 = vadd.f32 %v779, %v914
        %916 = vmatmul.f32.gmra.mxu0 %v641
        %v917 = vpop.f32.mrf.mxu0
        %v918 = vadd.f32 %v784, %v917
        %919 = vmatmul.f32.gmra.mxu0 %v650
        %v920 = vpop.f32.mrf.mxu0
        %v921 = vadd.f32 %v789, %v920
        %922 = vmatmul.f32.gmra.mxu0 %v659
        %v923 = vpop.f32.mrf.mxu0
        %v924 = vadd.f32 %v794, %v923
        %925 = vmatmul.f32.gmra.mxu0 %v668
        %v926 = vpop.f32.mrf.mxu0
        %v927 = vadd.f32 %v799, %v926
        %928 = vmatmul.f32.gmra.mxu0 %v677
        %v929 = vpop.f32.mrf.mxu0
        %v930 = vadd.f32 %v804, %v929
        %931 = vmatmul.f32.gmra.mxu0 %v686
        %v932 = vpop.f32.mrf.mxu0
        %v933 = vadd.f32 %v809, %v932
        %934 = vmatmul.f32.gmra.mxu0 %v695
        %v935 = vpop.f32.mrf.mxu0
        %v936 = vadd.f32 %v814, %v935
        %937 = vmatmul.f32.gmra.mxu0 %v704
        %v938 = vpop.f32.mrf.mxu0
        %v939 = vadd.f32 %v819, %v938
        %940 = vmatmul.f32.gmra.mxu0 %v713
        %v941 = vpop.f32.mrf.mxu0
        %v942 = vadd.f32 %v824, %v941
        %943 = vmatmul.f32.gmra.mxu0 %v722
        %v944 = vpop.f32.mrf.mxu0
        %v945 = vadd.f32 %v829, %v944
        %946 = vmatmul.f32.gmra.mxu0 %v731
        %v947 = vpop.f32.mrf.mxu0
        %v948 = vadd.f32 %v834, %v947
        %949 = vdwg.mxu0
        %950 = vmatpush.msra.mxu0 %v499
        %951 = vmatpush.msra.mxu0 %v498
        %952 = vmatpush.msra.mxu0 %v497
        %953 = vmatpush.msra.mxu0 %v496
        %954 = vmatpush.msra.mxu0 %v495
        %955 = vmatpush.msra.mxu0 %v494
        %956 = vmatpush.msra.mxu0 %v493
        %957 = vmatpush.msra.mxu0 %v492
        %958 = vmatpush.msra.mxu0 %v491
        %959 = vmatpush.msra.mxu0 %v490
        %960 = vmatpush.msra.mxu0 %v489
        %961 = vmatpush.msra.mxu0 %v488
        %962 = vmatpush.msra.mxu0 %v487
        %963 = vmatpush.msra.mxu0 %v486
        %964 = vmatpush.msra.mxu0 %v485
        %965 = vmatpush.msra.mxu0 %v484
        %966 = vmatmul.f32.gmra.mxu0 %v597
        %v967 = vpop.f32.mrf.mxu0
        %v968 = vadd.f32 %v903, %v967
        %969 = vmatmul.f32.gmra.mxu0 %v606
        %v970 = vpop.f32.mrf.mxu0
        %v971 = vadd.f32 %v906, %v970
        %972 = vmatmul.f32.gmra.mxu0 %v615
        %v973 = vpop.f32.mrf.mxu0
        %v974 = vadd.f32 %v909, %v973
        %975 = vmatmul.f32.gmra.mxu0 %v624
        %v976 = vpop.f32.mrf.mxu0
        %v977 = vadd.f32 %v912, %v976
        %978 = vmatmul.f32.gmra.mxu0 %v633
        %v979 = vpop.f32.mrf.mxu0
        %v980 = vadd.f32 %v915, %v979
        %981 = vmatmul.f32.gmra.mxu0 %v642
        %v982 = vpop.f32.mrf.mxu0
        %v983 = vadd.f32 %v918, %v982
        %984 = vmatmul.f32.gmra.mxu0 %v651
        %v985 = vpop.f32.mrf.mxu0
        %v986 = vadd.f32 %v921, %v985
        %987 = vmatmul.f32.gmra.mxu0 %v660
        %v988 = vpop.f32.mrf.mxu0
        %v989 = vadd.f32 %v924, %v988
        %990 = vmatmul.f32.gmra.mxu0 %v669
        %v991 = vpop.f32.mrf.mxu0
        %v992 = vadd.f32 %v927, %v991
        %993 = vmatmul.f32.gmra.mxu0 %v678
        %v994 = vpop.f32.mrf.mxu0
        %v995 = vadd.f32 %v930, %v994
        %996 = vmatmul.f32.gmra.mxu0 %v687
        %v997 = vpop.f32.mrf.mxu0
        %v998 = vadd.f32 %v933, %v997
        %999 = vmatmul.f32.gmra.mxu0 %v696
        %v1000 = vpop.f32.mrf.mxu0
        %v1001 = vadd.f32 %v936, %v1000
        %1002 = vmatmul.f32.gmra.mxu0 %v705
        %v1003 = vpop.f32.mrf.mxu0
        %v1004 = vadd.f32 %v939, %v1003
        %1005 = vmatmul.f32.gmra.mxu0 %v714
        %v1006 = vpop.f32.mrf.mxu0
        %v1007 = vadd.f32 %v942, %v1006
        %1008 = vmatmul.f32.gmra.mxu0 %v723
        %v1009 = vpop.f32.mrf.mxu0
        %v1010 = vadd.f32 %v945, %v1009
        %1011 = vmatmul.f32.gmra.mxu0 %v732
        %v1012 = vpop.f32.mrf.mxu0
        %v1013 = vadd.f32 %v948, %v1012
        %1014 = vdwg.mxu0
        %1015 = vmatpush.msra.mxu0 %v515
        %1016 = vmatpush.msra.mxu0 %v514
        %1017 = vmatpush.msra.mxu0 %v513
        %1018 = vmatpush.msra.mxu0 %v512
        %1019 = vmatpush.msra.mxu0 %v511
        %1020 = vmatpush.msra.mxu0 %v510
        %1021 = vmatpush.msra.mxu0 %v509
        %1022 = vmatpush.msra.mxu0 %v508
        %1023 = vmatpush.msra.mxu0 %v507
        %1024 = vmatpush.msra.mxu0 %v506
        %1025 = vmatpush.msra.mxu0 %v505
        %1026 = vmatpush.msra.mxu0 %v504
        %1027 = vmatpush.msra.mxu0 %v503
        %1028 = vmatpush.msra.mxu0 %v502
        %1029 = vmatpush.msra.mxu0 %v501
        %1030 = vmatpush.msra.mxu0 %v500
        %1031 = vmatmul.f32.gmra.mxu0 %v598
        %v1032 = vpop.f32.mrf.mxu0
        %v1033 = vadd.f32 %v968, %v1032
        %1034 = vmatmul.f32.gmra.mxu0 %v607
        %v1035 = vpop.f32.mrf.mxu0
        %v1036 = vadd.f32 %v971, %v1035
        %1037 = vmatmul.f32.gmra.mxu0 %v616
        %v1038 = vpop.f32.mrf.mxu0
        %v1039 = vadd.f32 %v974, %v1038
        %1040 = vmatmul.f32.gmra.mxu0 %v625
        %v1041 = vpop.f32.mrf.mxu0
        %v1042 = vadd.f32 %v977, %v1041
        %1043 = vmatmul.f32.gmra.mxu0 %v634
        %v1044 = vpop.f32.mrf.mxu0
        %v1045 = vadd.f32 %v980, %v1044
        %1046 = vmatmul.f32.gmra.mxu0 %v643
        %v1047 = vpop.f32.mrf.mxu0
        %v1048 = vadd.f32 %v983, %v1047
        %1049 = vmatmul.f32.gmra.mxu0 %v652
        %v1050 = vpop.f32.mrf.mxu0
        %v1051 = vadd.f32 %v986, %v1050
        %1052 = vmatmul.f32.gmra.mxu0 %v661
        %v1053 = vpop.f32.mrf.mxu0
        %v1054 = vadd.f32 %v989, %v1053
        %1055 = vmatmul.f32.gmra.mxu0 %v670
        %v1056 = vpop.f32.mrf.mxu0
        %v1057 = vadd.f32 %v992, %v1056
        %1058 = vmatmul.f32.gmra.mxu0 %v679
        %v1059 = vpop.f32.mrf.mxu0
        %v1060 = vadd.f32 %v995, %v1059
        %1061 = vmatmul.f32.gmra.mxu0 %v688
        %v1062 = vpop.f32.mrf.mxu0
        %v1063 = vadd.f32 %v998, %v1062
        %1064 = vmatmul.f32.gmra.mxu0 %v697
        %v1065 = vpop.f32.mrf.mxu0
        %v1066 = vadd.f32 %v1001, %v1065
        %1067 = vmatmul.f32.gmra.mxu0 %v706
        %v1068 = vpop.f32.mrf.mxu0
        %v1069 = vadd.f32 %v1004, %v1068
        %1070 = vmatmul.f32.gmra.mxu0 %v715
        %v1071 = vpop.f32.mrf.mxu0
        %v1072 = vadd.f32 %v1007, %v1071
        %1073 = vmatmul.f32.gmra.mxu0 %v724
        %v1074 = vpop.f32.mrf.mxu0
        %v1075 = vadd.f32 %v1010, %v1074
        %1076 = vmatmul.f32.gmra.mxu0 %v733
        %v1077 = vpop.f32.mrf.mxu0
        %v1078 = vadd.f32 %v1013, %v1077
        %1079 = vdwg.mxu0
        %1080 = vmatpush.msra.mxu0 %v531
        %1081 = vmatpush.msra.mxu0 %v530
        %1082 = vmatpush.msra.mxu0 %v529
        %1083 = vmatpush.msra.mxu0 %v528
        %1084 = vmatpush.msra.mxu0 %v527
        %1085 = vmatpush.msra.mxu0 %v526
        %1086 = vmatpush.msra.mxu0 %v525
        %1087 = vmatpush.msra.mxu0 %v524
        %1088 = vmatpush.msra.mxu0 %v523
        %1089 = vmatpush.msra.mxu0 %v522
        %1090 = vmatpush.msra.mxu0 %v521
        %1091 = vmatpush.msra.mxu0 %v520
        %1092 = vmatpush.msra.mxu0 %v519
        %1093 = vmatpush.msra.mxu0 %v518
        %1094 = vmatpush.msra.mxu0 %v517
        %1095 = vmatpush.msra.mxu0 %v516
        %1096 = vmatmul.f32.gmra.mxu0 %v599
        %v1097 = vpop.f32.mrf.mxu0
        %v1098 = vadd.f32 %v1033, %v1097
        %1099 = vmatmul.f32.gmra.mxu0 %v608
        %v1100 = vpop.f32.mrf.mxu0
        %v1101 = vadd.f32 %v1036, %v1100
        %1102 = vmatmul.f32.gmra.mxu0 %v617
        %v1103 = vpop.f32.mrf.mxu0
        %v1104 = vadd.f32 %v1039, %v1103
        %1105 = vmatmul.f32.gmra.mxu0 %v626
        %v1106 = vpop.f32.mrf.mxu0
        %v1107 = vadd.f32 %v1042, %v1106
        %1108 = vmatmul.f32.gmra.mxu0 %v635
        %v1109 = vpop.f32.mrf.mxu0
        %v1110 = vadd.f32 %v1045, %v1109
        %1111 = vmatmul.f32.gmra.mxu0 %v644
        %v1112 = vpop.f32.mrf.mxu0
        %v1113 = vadd.f32 %v1048, %v1112
        %1114 = vmatmul.f32.gmra.mxu0 %v653
        %v1115 = vpop.f32.mrf.mxu0
        %v1116 = vadd.f32 %v1051, %v1115
        %1117 = vmatmul.f32.gmra.mxu0 %v662
        %v1118 = vpop.f32.mrf.mxu0
        %v1119 = vadd.f32 %v1054, %v1118
        %1120 = vmatmul.f32.gmra.mxu0 %v671
        %v1121 = vpop.f32.mrf.mxu0
        %v1122 = vadd.f32 %v1057, %v1121
        %1123 = vmatmul.f32.gmra.mxu0 %v680
        %v1124 = vpop.f32.mrf.mxu0
        %v1125 = vadd.f32 %v1060, %v1124
        %1126 = vmatmul.f32.gmra.mxu0 %v689
        %v1127 = vpop.f32.mrf.mxu0
        %v1128 = vadd.f32 %v1063, %v1127
        %1129 = vmatmul.f32.gmra.mxu0 %v698
        %v1130 = vpop.f32.mrf.mxu0
        %v1131 = vadd.f32 %v1066, %v1130
        %1132 = vmatmul.f32.gmra.mxu0 %v707
        %v1133 = vpop.f32.mrf.mxu0
        %v1134 = vadd.f32 %v1069, %v1133
        %1135 = vmatmul.f32.gmra.mxu0 %v716
        %v1136 = vpop.f32.mrf.mxu0
        %v1137 = vadd.f32 %v1072, %v1136
        %1138 = vmatmul.f32.gmra.mxu0 %v725
        %v1139 = vpop.f32.mrf.mxu0
        %v1140 = vadd.f32 %v1075, %v1139
        %1141 = vmatmul.f32.gmra.mxu0 %v734
        %v1142 = vpop.f32.mrf.mxu0
        %v1143 = vadd.f32 %v1078, %v1142
        %1144 = vdwg.mxu0
        %1145 = vmatpush.msra.mxu0 %v547
        %1146 = vmatpush.msra.mxu0 %v546
        %1147 = vmatpush.msra.mxu0 %v545
        %1148 = vmatpush.msra.mxu0 %v544
        %1149 = vmatpush.msra.mxu0 %v543
        %1150 = vmatpush.msra.mxu0 %v542
        %1151 = vmatpush.msra.mxu0 %v541
        %1152 = vmatpush.msra.mxu0 %v540
        %1153 = vmatpush.msra.mxu0 %v539
        %1154 = vmatpush.msra.mxu0 %v538
        %1155 = vmatpush.msra.mxu0 %v537
        %1156 = vmatpush.msra.mxu0 %v536
        %1157 = vmatpush.msra.mxu0 %v535
        %1158 = vmatpush.msra.mxu0 %v534
        %1159 = vmatpush.msra.mxu0 %v533
        %1160 = vmatpush.msra.mxu0 %v532
        %1161 = vmatmul.f32.gmra.mxu0 %v600
        %v1162 = vpop.f32.mrf.mxu0
        %v1163 = vadd.f32 %v1098, %v1162
        %1164 = vmatmul.f32.gmra.mxu0 %v609
        %v1165 = vpop.f32.mrf.mxu0
        %v1166 = vadd.f32 %v1101, %v1165
        %1167 = vmatmul.f32.gmra.mxu0 %v618
        %v1168 = vpop.f32.mrf.mxu0
        %v1169 = vadd.f32 %v1104, %v1168
        %1170 = vmatmul.f32.gmra.mxu0 %v627
        %v1171 = vpop.f32.mrf.mxu0
        %v1172 = vadd.f32 %v1107, %v1171
        %1173 = vmatmul.f32.gmra.mxu0 %v636
        %v1174 = vpop.f32.mrf.mxu0
        %v1175 = vadd.f32 %v1110, %v1174
        %1176 = vmatmul.f32.gmra.mxu0 %v645
        %v1177 = vpop.f32.mrf.mxu0
        %v1178 = vadd.f32 %v1113, %v1177
        %1179 = vmatmul.f32.gmra.mxu0 %v654
        %v1180 = vpop.f32.mrf.mxu0
        %v1181 = vadd.f32 %v1116, %v1180
        %1182 = vmatmul.f32.gmra.mxu0 %v663
        %v1183 = vpop.f32.mrf.mxu0
        %v1184 = vadd.f32 %v1119, %v1183
        %1185 = vmatmul.f32.gmra.mxu0 %v672
        %v1186 = vpop.f32.mrf.mxu0
        %v1187 = vadd.f32 %v1122, %v1186
        %1188 = vmatmul.f32.gmra.mxu0 %v681
        %v1189 = vpop.f32.mrf.mxu0
        %v1190 = vadd.f32 %v1125, %v1189
        %1191 = vmatmul.f32.gmra.mxu0 %v690
        %v1192 = vpop.f32.mrf.mxu0
        %v1193 = vadd.f32 %v1128, %v1192
        %1194 = vmatmul.f32.gmra.mxu0 %v699
        %v1195 = vpop.f32.mrf.mxu0
        %v1196 = vadd.f32 %v1131, %v1195
        %1197 = vmatmul.f32.gmra.mxu0 %v708
        %v1198 = vpop.f32.mrf.mxu0
        %v1199 = vadd.f32 %v1134, %v1198
        %1200 = vmatmul.f32.gmra.mxu0 %v717
        %v1201 = vpop.f32.mrf.mxu0
        %v1202 = vadd.f32 %v1137, %v1201
        %1203 = vmatmul.f32.gmra.mxu0 %v726
        %v1204 = vpop.f32.mrf.mxu0
        %v1205 = vadd.f32 %v1140, %v1204
        %1206 = vmatmul.f32.gmra.mxu0 %v735
        %v1207 = vpop.f32.mrf.mxu0
        %v1208 = vadd.f32 %v1143, %v1207
        %1209 = vdwg.mxu0
        %1210 = vmatpush.msra.mxu0 %v563
        %1211 = vmatpush.msra.mxu0 %v562
        %1212 = vmatpush.msra.mxu0 %v561
        %1213 = vmatpush.msra.mxu0 %v560
        %1214 = vmatpush.msra.mxu0 %v559
        %1215 = vmatpush.msra.mxu0 %v558
        %1216 = vmatpush.msra.mxu0 %v557
        %1217 = vmatpush.msra.mxu0 %v556
        %1218 = vmatpush.msra.mxu0 %v555
        %1219 = vmatpush.msra.mxu0 %v554
        %1220 = vmatpush.msra.mxu0 %v553
        %1221 = vmatpush.msra.mxu0 %v552
        %1222 = vmatpush.msra.mxu0 %v551
        %1223 = vmatpush.msra.mxu0 %v550
        %1224 = vmatpush.msra.mxu0 %v549
        %1225 = vmatpush.msra.mxu0 %v548
        %1226 = vmatmul.f32.gmra.mxu0 %v601
        %v1227 = vpop.f32.mrf.mxu0
        %v1228 = vadd.f32 %v1163, %v1227
        %1229 = vmatmul.f32.gmra.mxu0 %v610
        %v1230 = vpop.f32.mrf.mxu0
        %v1231 = vadd.f32 %v1166, %v1230
        %1232 = vmatmul.f32.gmra.mxu0 %v619
        %v1233 = vpop.f32.mrf.mxu0
        %v1234 = vadd.f32 %v1169, %v1233
        %1235 = vmatmul.f32.gmra.mxu0 %v628
        %v1236 = vpop.f32.mrf.mxu0
        %v1237 = vadd.f32 %v1172, %v1236
        %1238 = vmatmul.f32.gmra.mxu0 %v637
        %v1239 = vpop.f32.mrf.mxu0
        %v1240 = vadd.f32 %v1175, %v1239
        %1241 = vmatmul.f32.gmra.mxu0 %v646
        %v1242 = vpop.f32.mrf.mxu0
        %v1243 = vadd.f32 %v1178, %v1242
        %1244 = vmatmul.f32.gmra.mxu0 %v655
        %v1245 = vpop.f32.mrf.mxu0
        %v1246 = vadd.f32 %v1181, %v1245
        %1247 = vmatmul.f32.gmra.mxu0 %v664
        %v1248 = vpop.f32.mrf.mxu0
        %v1249 = vadd.f32 %v1184, %v1248
        %1250 = vmatmul.f32.gmra.mxu0 %v673
        %v1251 = vpop.f32.mrf.mxu0
        %v1252 = vadd.f32 %v1187, %v1251
        %1253 = vmatmul.f32.gmra.mxu0 %v682
        %v1254 = vpop.f32.mrf.mxu0
        %v1255 = vadd.f32 %v1190, %v1254
        %1256 = vmatmul.f32.gmra.mxu0 %v691
        %v1257 = vpop.f32.mrf.mxu0
        %v1258 = vadd.f32 %v1193, %v1257
        %1259 = vmatmul.f32.gmra.mxu0 %v700
        %v1260 = vpop.f32.mrf.mxu0
        %v1261 = vadd.f32 %v1196, %v1260
        %1262 = vmatmul.f32.gmra.mxu0 %v709
        %v1263 = vpop.f32.mrf.mxu0
        %v1264 = vadd.f32 %v1199, %v1263
        %1265 = vmatmul.f32.gmra.mxu0 %v718
        %v1266 = vpop.f32.mrf.mxu0
        %v1267 = vadd.f32 %v1202, %v1266
        %1268 = vmatmul.f32.gmra.mxu0 %v727
        %v1269 = vpop.f32.mrf.mxu0
        %v1270 = vadd.f32 %v1205, %v1269
        %1271 = vmatmul.f32.gmra.mxu0 %v736
        %v1272 = vpop.f32.mrf.mxu0
        %v1273 = vadd.f32 %v1208, %v1272
        %1274 = vdwg.mxu0
        %1275 = vmatpush.msra.mxu0 %v579
        %1276 = vmatpush.msra.mxu0 %v578
        %1277 = vmatpush.msra.mxu0 %v577
        %1278 = vmatpush.msra.mxu0 %v576
        %1279 = vmatpush.msra.mxu0 %v575
        %1280 = vmatpush.msra.mxu0 %v574
        %1281 = vmatpush.msra.mxu0 %v573
        %1282 = vmatpush.msra.mxu0 %v572
        %1283 = vmatpush.msra.mxu0 %v571
        %1284 = vmatpush.msra.mxu0 %v570
        %1285 = vmatpush.msra.mxu0 %v569
        %1286 = vmatpush.msra.mxu0 %v568
        %1287 = vmatpush.msra.mxu0 %v567
        %1288 = vmatpush.msra.mxu0 %v566
        %1289 = vmatpush.msra.mxu0 %v565
        %1290 = vmatpush.msra.mxu0 %v564
        %1291 = vmatmul.f32.gmra.mxu0 %v602
        %v1292 = vpop.f32.mrf.mxu0
        %v1293 = vadd.f32 %v1228, %v1292
        %1294 = vmatmul.f32.gmra.mxu0 %v611
        %v1295 = vpop.f32.mrf.mxu0
        %v1296 = vadd.f32 %v1231, %v1295
        %1297 = vmatmul.f32.gmra.mxu0 %v620
        %v1298 = vpop.f32.mrf.mxu0
        %v1299 = vadd.f32 %v1234, %v1298
        %1300 = vmatmul.f32.gmra.mxu0 %v629
        %v1301 = vpop.f32.mrf.mxu0
        %v1302 = vadd.f32 %v1237, %v1301
        %1303 = vmatmul.f32.gmra.mxu0 %v638
        %v1304 = vpop.f32.mrf.mxu0
        %v1305 = vadd.f32 %v1240, %v1304
        %1306 = vmatmul.f32.gmra.mxu0 %v647
        %v1307 = vpop.f32.mrf.mxu0
        %v1308 = vadd.f32 %v1243, %v1307
        %1309 = vmatmul.f32.gmra.mxu0 %v656
        %v1310 = vpop.f32.mrf.mxu0
        %v1311 = vadd.f32 %v1246, %v1310
        %1312 = vmatmul.f32.gmra.mxu0 %v665
        %v1313 = vpop.f32.mrf.mxu0
        %v1314 = vadd.f32 %v1249, %v1313
        %1315 = vmatmul.f32.gmra.mxu0 %v674
        %v1316 = vpop.f32.mrf.mxu0
        %v1317 = vadd.f32 %v1252, %v1316
        %1318 = vmatmul.f32.gmra.mxu0 %v683
        %v1319 = vpop.f32.mrf.mxu0
        %v1320 = vadd.f32 %v1255, %v1319
        %1321 = vmatmul.f32.gmra.mxu0 %v692
        %v1322 = vpop.f32.mrf.mxu0
        %v1323 = vadd.f32 %v1258, %v1322
        %1324 = vmatmul.f32.gmra.mxu0 %v701
        %v1325 = vpop.f32.mrf.mxu0
        %v1326 = vadd.f32 %v1261, %v1325
        %1327 = vmatmul.f32.gmra.mxu0 %v710
        %v1328 = vpop.f32.mrf.mxu0
        %v1329 = vadd.f32 %v1264, %v1328
        %1330 = vmatmul.f32.gmra.mxu0 %v719
        %v1331 = vpop.f32.mrf.mxu0
        %v1332 = vadd.f32 %v1267, %v1331
        %1333 = vmatmul.f32.gmra.mxu0 %v728
        %v1334 = vpop.f32.mrf.mxu0
        %v1335 = vadd.f32 %v1270, %v1334
        %1336 = vmatmul.f32.gmra.mxu0 %v737
        %v1337 = vpop.f32.mrf.mxu0
        %v1338 = vadd.f32 %v1273, %v1337
        %1339 = vdwg.mxu0
        %1340 = vmatpush.msra.mxu0 %v595
        %1341 = vmatpush.msra.mxu0 %v594
        %1342 = vmatpush.msra.mxu0 %v593
        %1343 = vmatpush.msra.mxu0 %v592
        %1344 = vmatpush.msra.mxu0 %v591
        %1345 = vmatpush.msra.mxu0 %v590
        %1346 = vmatpush.msra.mxu0 %v589
        %1347 = vmatpush.msra.mxu0 %v588
        %1348 = vmatpush.msra.mxu0 %v587
        %1349 = vmatpush.msra.mxu0 %v586
        %1350 = vmatpush.msra.mxu0 %v585
        %1351 = vmatpush.msra.mxu0 %v584
        %1352 = vmatpush.msra.mxu0 %v583
        %1353 = vmatpush.msra.mxu0 %v582
        %1354 = vmatpush.msra.mxu0 %v581
        %1355 = vmatpush.msra.mxu0 %v580
        %1356 = vmatmul.f32.gmra.mxu0 %v603
        %v1357 = vpop.f32.mrf.mxu0
        %v1358 = vadd.f32 %v1293, %v1357
        %1359 = vmatmul.f32.gmra.mxu0 %v612
        %v1360 = vpop.f32.mrf.mxu0
        %v1361 = vadd.f32 %v1296, %v1360
        %1362 = vmatmul.f32.gmra.mxu0 %v621
        %v1363 = vpop.f32.mrf.mxu0
        %v1364 = vadd.f32 %v1299, %v1363
        %1365 = vmatmul.f32.gmra.mxu0 %v630
        %v1366 = vpop.f32.mrf.mxu0
        %v1367 = vadd.f32 %v1302, %v1366
        %1368 = vmatmul.f32.gmra.mxu0 %v639
        %v1369 = vpop.f32.mrf.mxu0
        %v1370 = vadd.f32 %v1305, %v1369
        %1371 = vmatmul.f32.gmra.mxu0 %v648
        %v1372 = vpop.f32.mrf.mxu0
        %v1373 = vadd.f32 %v1308, %v1372
        %1374 = vmatmul.f32.gmra.mxu0 %v657
        %v1375 = vpop.f32.mrf.mxu0
        %v1376 = vadd.f32 %v1311, %v1375
        %1377 = vmatmul.f32.gmra.mxu0 %v666
        %v1378 = vpop.f32.mrf.mxu0
        %v1379 = vadd.f32 %v1314, %v1378
        %1380 = vmatmul.f32.gmra.mxu0 %v675
        %v1381 = vpop.f32.mrf.mxu0
        %v1382 = vadd.f32 %v1317, %v1381
        %1383 = vmatmul.f32.gmra.mxu0 %v684
        %v1384 = vpop.f32.mrf.mxu0
        %v1385 = vadd.f32 %v1320, %v1384
        %1386 = vmatmul.f32.gmra.mxu0 %v693
        %v1387 = vpop.f32.mrf.mxu0
        %v1388 = vadd.f32 %v1323, %v1387
        %1389 = vmatmul.f32.gmra.mxu0 %v702
        %v1390 = vpop.f32.mrf.mxu0
        %v1391 = vadd.f32 %v1326, %v1390
        %1392 = vmatmul.f32.gmra.mxu0 %v711
        %v1393 = vpop.f32.mrf.mxu0
        %v1394 = vadd.f32 %v1329, %v1393
        %1395 = vmatmul.f32.gmra.mxu0 %v720
        %v1396 = vpop.f32.mrf.mxu0
        %v1397 = vadd.f32 %v1332, %v1396
        %1398 = vmatmul.f32.gmra.mxu0 %v729
        %v1399 = vpop.f32.mrf.mxu0
        %v1400 = vadd.f32 %v1335, %v1399
        %1401 = vmatmul.f32.gmra.mxu0 %v738
        %v1402 = vpop.f32.mrf.mxu0
        %v1403 = vadd.f32 %v1338, %v1402
        %1404 = vdwg.mxu0
        %1405 = vmatpush.msra.mxu0 0.0
        %1406 = vmatpush.msra.mxu0 0.0
        %1407 = vmatpush.msra.mxu0 0.0
        %1408 = vmatpush.msra.mxu0 0.0
        %1409 = vmatpush.msra.mxu0 0.0
        %1410 = vmatpush.msra.mxu0 0.0
        %1411 = vmatpush.msra.mxu0 0.0
        %1412 = vmatpush.msra.mxu0 0.0
        %1413 = vmatpush.msra.mxu0 %v371
        %1414 = vmatpush.msra.mxu0 %v370
        %1415 = vmatpush.msra.mxu0 %v369
        %1416 = vmatpush.msra.mxu0 %v368
        %1417 = vmatpush.msra.mxu0 %v367
        %1418 = vmatpush.msra.mxu0 %v366
        %1419 = vmatpush.msra.mxu0 %v365
        %1420 = vmatpush.msra.mxu0 %v364
        %1421 = vmatmul.f32.gmra.mxu0 %v838
        %v1422 = vpop.f32.mrf.mxu0
        %v1423 = vadd.f32 %v1358, %v1422
        %1424 = vmatmul.f32.gmra.mxu0 %v841
        %v1425 = vpop.f32.mrf.mxu0
        %v1426 = vadd.f32 %v1361, %v1425
        %1427 = vmatmul.f32.gmra.mxu0 %v844
        %v1428 = vpop.f32.mrf.mxu0
        %v1429 = vadd.f32 %v1364, %v1428
        %1430 = vmatmul.f32.gmra.mxu0 %v847
        %v1431 = vpop.f32.mrf.mxu0
        %v1432 = vadd.f32 %v1367, %v1431
        %1433 = vmatmul.f32.gmra.mxu0 %v850
        %v1434 = vpop.f32.mrf.mxu0
        %v1435 = vadd.f32 %v1370, %v1434
        %1436 = vmatmul.f32.gmra.mxu0 %v853
        %v1437 = vpop.f32.mrf.mxu0
        %v1438 = vadd.f32 %v1373, %v1437
        %1439 = vmatmul.f32.gmra.mxu0 %v856
        %v1440 = vpop.f32.mrf.mxu0
        %v1441 = vadd.f32 %v1376, %v1440
        %1442 = vmatmul.f32.gmra.mxu0 %v859
        %v1443 = vpop.f32.mrf.mxu0
        %v1444 = vadd.f32 %v1379, %v1443
        %1445 = vmatmul.f32.gmra.mxu0 %v862
        %v1446 = vpop.f32.mrf.mxu0
        %v1447 = vadd.f32 %v1382, %v1446
        %1448 = vmatmul.f32.gmra.mxu0 %v865
        %v1449 = vpop.f32.mrf.mxu0
        %v1450 = vadd.f32 %v1385, %v1449
        %1451 = vmatmul.f32.gmra.mxu0 %v868
        %v1452 = vpop.f32.mrf.mxu0
        %v1453 = vadd.f32 %v1388, %v1452
        %1454 = vmatmul.f32.gmra.mxu0 %v871
        %v1455 = vpop.f32.mrf.mxu0
        %v1456 = vadd.f32 %v1391, %v1455
        %1457 = vmatmul.f32.gmra.mxu0 %v874
        %v1458 = vpop.f32.mrf.mxu0
        %v1459 = vadd.f32 %v1394, %v1458
        %1460 = vmatmul.f32.gmra.mxu0 %v877
        %v1461 = vpop.f32.mrf.mxu0
        %v1462 = vadd.f32 %v1397, %v1461
        %1463 = vmatmul.f32.gmra.mxu0 %v880
        %v1464 = vpop.f32.mrf.mxu0
        %v1465 = vadd.f32 %v1400, %v1464
        %1466 = vmatmul.f32.gmra.mxu0 %v883
        %v1467 = vpop.f32.mrf.mxu0
        %v1468 = vadd.f32 %v1403, %v1467
        %1469 = vdwg.mxu0
        %v1470 = vtanh.pop %v1423
        %v1471 = vtanh.pop %v1426
        %v1472 = vtanh.pop %v1429
        %v1473 = vtanh.pop %v1432
        %v1474 = vtanh.pop %v1435
        %v1475 = vtanh.pop %v1438
        %v1476 = vtanh.pop %v1441
        %v1477 = vtanh.pop %v1444
        %v1478 = vtanh.pop %v1447
        %v1479 = vtanh.pop %v1450
        %v1480 = vtanh.pop %v1453
        %v1481 = vtanh.pop %v1456
        %v1482 = vtanh.pop %v1459
        %v1483 = vtanh.pop %v1462
        %v1484 = vtanh.pop %v1465
        %v1485 = vtanh.pop %v1468
        %v1486 = vld [vmem:[%s4] sm:$0xff]
        %v1487 = vld [vmem:[%s4 + $0x8] sm:$0xff]
        %v1488 = vld [vmem:[%s4 + $0x10] sm:$0xff]
        %v1489 = vld [vmem:[%s4 + $0x18] sm:$0xff]
        %v1490 = vld [vmem:[%s4 + $0x20] sm:$0xff]
        %v1491 = vld [vmem:[%s4 + $0x28] sm:$0xff]
        %v1492 = vld [vmem:[%s4 + $0x30] sm:$0xff]
        %v1493 = vld [vmem:[%s4 + $0x38] sm:$0xff]
        %v1494 = vld [vmem:[%s4 + $0x40] sm:$0xff]
        %v1495 = vld [vmem:[%s4 + $0x48] sm:$0xff]
        %v1496 = vld [vmem:[%s4 + $0x50] sm:$0xff]
        %v1497 = vld [vmem:[%s4 + $0x58] sm:$0xff]
        %v1498 = vld [vmem:[%s4 + $0x60] sm:$0xff]
        %v1499 = vld [vmem:[%s4 + $0x68] sm:$0xff]
        %v1500 = vld [vmem:[%s4 + $0x70] sm:$0xff]
        %v1501 = vld [vmem:[%s4 + $0x78] sm:$0xff]
        %1503 = vset.pattern.permute.xlu0 0
        %1504 = vperm.xlu0 %1503, %v1486
        %v1505 = vpop.permute.xlu0 %1504
        %1508 = vset.pattern.permute.xlu0 0
        %1509 = vperm.xlu0 %1508, %v1487
        %v1510 = vpop.permute.xlu0 %1509
        %1513 = vset.pattern.permute.xlu0 0
        %1514 = vperm.xlu0 %1513, %v1488
        %v1515 = vpop.permute.xlu0 %1514
        %1518 = vset.pattern.permute.xlu0 0
        %1519 = vperm.xlu0 %1518, %v1489
        %v1520 = vpop.permute.xlu0 %1519
        %1523 = vset.pattern.permute.xlu0 0
        %1524 = vperm.xlu0 %1523, %v1490
        %v1525 = vpop.permute.xlu0 %1524
        %1528 = vset.pattern.permute.xlu0 0
        %1529 = vperm.xlu0 %1528, %v1491
        %v1530 = vpop.permute.xlu0 %1529
        %1533 = vset.pattern.permute.xlu0 0
        %1534 = vperm.xlu0 %1533, %v1492
        %v1535 = vpop.permute.xlu0 %1534
        %1538 = vset.pattern.permute.xlu0 0
        %1539 = vperm.xlu0 %1538, %v1493
        %v1540 = vpop.permute.xlu0 %1539
        %1543 = vset.pattern.permute.xlu0 0
        %1544 = vperm.xlu0 %1543, %v1494
        %v1545 = vpop.permute.xlu0 %1544
        %1548 = vset.pattern.permute.xlu0 0
        %1549 = vperm.xlu0 %1548, %v1495
        %v1550 = vpop.permute.xlu0 %1549
        %1553 = vset.pattern.permute.xlu0 0
        %1554 = vperm.xlu0 %1553, %v1496
        %v1555 = vpop.permute.xlu0 %1554
        %1558 = vset.pattern.permute.xlu0 0
        %1559 = vperm.xlu0 %1558, %v1497
        %v1560 = vpop.permute.xlu0 %1559
        %1563 = vset.pattern.permute.xlu0 0
        %1564 = vperm.xlu0 %1563, %v1498
        %v1565 = vpop.permute.xlu0 %1564
        %1568 = vset.pattern.permute.xlu0 0
        %1569 = vperm.xlu0 %1568, %v1499
        %v1570 = vpop.permute.xlu0 %1569
        %1573 = vset.pattern.permute.xlu0 0
        %1574 = vperm.xlu0 %1573, %v1500
        %v1575 = vpop.permute.xlu0 %1574
        %1578 = vset.pattern.permute.xlu0 0
        %1579 = vperm.xlu0 %1578, %v1501
        %v1580 = vpop.permute.xlu0 %1579
        %v1582 = vmul.f32 %v1470, %v1505
        %v1583 = vmul.f32 %v1471, %v1510
        %v1584 = vmul.f32 %v1472, %v1515
        %v1585 = vmul.f32 %v1473, %v1520
        %v1586 = vmul.f32 %v1474, %v1525
        %v1587 = vmul.f32 %v1475, %v1530
        %v1588 = vmul.f32 %v1476, %v1535
        %v1589 = vmul.f32 %v1477, %v1540
        %v1590 = vmul.f32 %v1478, %v1545
        %v1591 = vmul.f32 %v1479, %v1550
        %v1592 = vmul.f32 %v1480, %v1555
        %v1593 = vmul.f32 %v1481, %v1560
        %v1594 = vmul.f32 %v1482, %v1565
        %v1595 = vmul.f32 %v1483, %v1570
        %v1596 = vmul.f32 %v1484, %v1575
        %v1597 = vmul.f32 %v1485, %v1580
        %v1598 = vadd.f32 %v1582, %v1583
        %v1599 = vadd.f32 %v1598, %v1584
        %v1600 = vadd.f32 %v1599, %v1585
        %v1601 = vadd.f32 %v1600, %v1586
        %v1602 = vadd.f32 %v1601, %v1587
        %v1603 = vadd.f32 %v1602, %v1588
        %v1604 = vadd.f32 %v1603, %v1589
        %v1605 = vadd.f32 %v1604, %v1590
        %v1606 = vadd.f32 %v1605, %v1591
        %v1607 = vadd.f32 %v1606, %v1592
        %v1608 = vadd.f32 %v1607, %v1593
        %v1609 = vadd.f32 %v1608, %v1594
        %v1610 = vadd.f32 %v1609, %v1595
        %v1611 = vadd.f32 %v1610, %v1596
        %v1612 = vadd.f32 %v1611, %v1597
        %v1613 = vrot.slane %v1612, 4
        %v1614 = vadd.f32 %v1612, %v1613
        %v1615 = vrot.slane %v1614, 2
        %v1616 = vadd.f32 %v1614, %v1615
        %v1617 = vrot.slane %v1616, 1
        %v1618 = vadd.f32 %v1616, %v1617
        %s1619 = sld [smem:[#allocation2]]
        %v1620 = vstv %s1619
        %v1621 = vadd.f32 %v1618, %v1620
        %v1622 = vxor.u32 %v1621, 2147483648
        %v1623 = vmul.f32 %v1622, 1.442695
        %v1624 = vpow.pop %v1623
        %v1625 = vadd.f32 %v1624, 1.0
        %v1626 = vrcp.pop %v1625
        %v1627 = vmul.f32 %v1625, %v1626
        %v1628 = vsub.f32 1.0, %v1627
        %v1629 = vmul.f32 %v1626, %v1628
        %v1630 = vadd.f32 %v1626, %v1629
        %vm1631 = vweird.f32 %v1625
        %vm1632 = vweird.f32 %v1626
        %vm1633 = vmor %vm1631, %vm1632
        %v1634 = vsel %vm1633, %v1626, %v1630
        %v1635 = vand.u32 2147483647, %v1625
        %vm1636 = vcmp.eq.f32.partialorder %v1635, 8.507059e+37
        %v1637 = vand.u32 %v1625, 2147483648
        %v1638 = vor.u32 1.1754944e-38, %v1637
        %v1639 = vsel %vm1636, %v1638, %v1634
        %v1640 = vmul.f32 1.0, %v1639
        %1641 = vst [vmem:[%s363] sm:$0x1] %v1640
        %s1642 = sand.u32 %s165, 1
        %s1643 = scalar_lea.sflag [#allocation6], %s1642
        %s1644 = sand.u32 %s165, 1
        %s1645 = scalar_lea.vmem [#allocation5], %s1644
        // Predicated region
        $region121: #{tpu_custom_call.1} parent=111 // pred_check
          %p1646 = pneg %p175
        $region122: #{tpu_custom_call.1} parent=111 // pred_check_branch
          %1648 = sbr.rel (%p1646) target = $region124
        $region123: #{tpu_custom_call.1} parent=111 // pred_region
          %1650 = vsyncadd %s1643, 0
          %s1651 = scalar_lea.hbm %s6, %s21
          %s1653 = sshll.u32 %s1645, 4
          %s1654 = int_to_ptr.vmem [resolvable:$true] %s1653
          %s1655 = sshll.u32 %s1651, 4
          %s1656 = int_to_ptr.hbm [resolvable:$true] %s1655
          %1658 = dma.vmem_to_hbm [thread:$0]  %s1654, 16, %s1656, %s1643
        $region124: #{tpu_custom_call.1} parent=111 // pred_fallthru
          _
      $region112: #{tpu_custom_call.1} parent=5 // pred_fallthru
        _
      %p1659 = scmp.le.s32.totalorder 2, %s16
      // Predicated region
      $region125: #{tpu_custom_call.1} parent=5 // pred_check
        %p1660 = pneg %p1659
      $region126: #{tpu_custom_call.1} parent=5 // pred_check_branch
        %1662 = sbr.rel (%p1660) target = $region128
      $region127: #{tpu_custom_call.1} parent=5 // pred_region
        %s1663 = ssub.s32 %s16, 2
        // Predicated region
        $region129: #{tpu_custom_call.1} parent=127 // pred_check
          %p1664 = pneg %p181
        $region130: #{tpu_custom_call.1} parent=127 // pred_check_branch
          %1666 = sbr.rel (%p1664) target = $region132
        $region131: #{tpu_custom_call.1} parent=127 // pred_region
          %s1667 = sand.u32 %s166, 1
          %s1668 = scalar_lea.sflag [#allocation6], %s1667
          %s1669 = sand.u32 %s166, 1
          %s1670 = scalar_lea.vmem [#allocation5], %s1669
          %1672 = dma.done %s1668, 16
        $region132: #{tpu_custom_call.1} parent=127 // pred_fallthru
          _
      $region128: #{tpu_custom_call.1} parent=5 // pred_fallthru
        _
    $region6: #{tpu_custom_call.1} parent=1 // loop_footer
      %s20 = sadd.s32 1, %s16
    $region7: #{tpu_custom_call.1} parent=1 // loop_footer_branch
      %15 = sbr.rel target = $region3
    $region8: #{tpu_custom_call.1} parent=1 // loop_exit
      _
    %1673 = vsyncpa [#allocation6], 1
    %s1674 = scalar_lea.sflag [#allocation6], 1
    %1675 = vsyncpa %s1674, 1

</llo_original>
